<compile_context>
chip_gen: v5e
topology: v5e:2x2
jax: 0.10.0
libtpu: 0.0.40
codegen_flags: <defaults>
</compile_context>

<pallas_src>
import functools
import math

import numpy as np
import jax
import jax.numpy as jnp
from jax.experimental import pallas as pl
from jax.experimental.pallas import tpu as pltpu


# ----------------------------- Pallas kernel -----------------------------
def _block_spmm_kernel(row_ref, col_ref, first_ref, adj_ref, emb_ref, out_ref, *, tk):
    """One grid step = one nonzero (tm, tk) block of adj.

    out[row_blk] += adj_blk @ embeds[col_blk*tk : (col_blk+1)*tk, :]

    adj_ref : (1, tm, tk) bf16  current packed nonzero block (sequential DMA)
    emb_ref : (K, D)      bf16  whole embeds table, VMEM-resident (DMA'd once)
    out_ref : (tm, D)     f32   resident while the row block is unchanged;
                                doubles as the accumulator (no scratch needed)
    """
    s = pl.program_id(0)

    @pl.when(first_ref[s] == 1)          # first nonzero block of this row block
    def _init():
        out_ref[...] = jnp.zeros_like(out_ref)

    start = pl.multiple_of(col_ref[s] * tk, tk)
    out_ref[...] += jnp.dot(
        adj_ref[0],                        # (tm, tk) bf16
        emb_ref[pl.ds(start, tk), :],      # (tk, D)  bf16, sliced from resident table
        preferred_element_type=jnp.float32,
    )


# ------------------------------- Wrapper ----------------------------------
def gcn_layer_forward(adj, embeds, *, tm=512, tk=512):
    """GCNLayer.forward(adj, embeds) == spmm(adj, embeds), block-sparse on TPU.

    NOTE: adj must be concrete (host-visible); the block-sparsity analysis and
    compact packing run once on the host (the adjacency is fixed in GCCF), so
    this wrapper is not jit-able / differentiable w.r.t. adj.
    """
    N, K = adj.shape
    K2, D = embeds.shape
    assert K == K2, "inner dims must match"
    tm, tk = min(tm, N), min(tk, K)
    # TODO(synk): generalize to non-multiple sizes with masked edge tiles.
    assert N % tm == 0 and K % tk == 0, "demo assumes exact tiling"
    assert D % 128 == 0, "output last dim must be lane-dense (latdim = 128)"

    nb_m, nb_k = N // tm, K // tk

    # ---- host-side, one-time: block-sparsity analysis + compact packing ----
    adj_np = np.asarray(adj, dtype=np.float32)
    blocks = adj_np.reshape(nb_m, tm, nb_k, tk)
    blk_nz = np.abs(blocks).sum(axis=(1, 3)) > 0            # (nb_m, nb_k)
    for bi in range(nb_m):                                   # empty row block:
        if not blk_nz[bi].any():                             # keep one (zero) block
            blk_nz[bi, 0] = True                             # so its output is written
    rows, cols = np.nonzero(blk_nz)                          # row-major -> row-contiguous
    total = int(rows.size)
    packed = np.empty((total, tm, tk), dtype=np.float32)
    for n in range(total):
        packed[n] = blocks[rows[n], :, cols[n], :]

    first = np.zeros(total, dtype=np.int32)
    first[0] = 1
    if total > 1:
        first[1:] = (rows[1:] != rows[:-1]).astype(np.int32)

    row_dev = jnp.asarray(rows.astype(np.int32))
    col_dev = jnp.asarray(cols.astype(np.int32))
    first_dev = jnp.asarray(first)

    # Compact bf16 operands on the wire / MXU; f32 accumulation in the kernel.
    # No dense N^2 device-side cast: only the nonzero blocks are materialized.
    adj_packed = jnp.asarray(packed, dtype=jnp.bfloat16)     # (total, tm, tk)
    emb_bf = embeds.astype(jnp.bfloat16)                     # (K, D), VMEM-resident

    emb_bytes = K * D * 2
    # TODO(synk): fall back to streaming (tk, D) embeds blocks when the table
    # does not fit VMEM (budget ~48 MiB, conservative for v7x's 64 MiB).
    assert emb_bytes <= 48 * 1024 * 1024, f"embeds too large for VMEM residency: {emb_bytes} B"

    # index_maps receive (grid_idx, *scalar_prefetch_refs) positionally.
    def adj_map(s, row, col, first):
        return (s, 0, 0)                                     # sequential packed stream

    def emb_map(s, row, col, first):
        return (0, 0)                                        # constant -> stays resident

    def out_map(s, row, col, first):
        return (row[s], 0)                                   # resident per row run

    kernel = functools.partial(_block_spmm_kernel, tk=tk)

    return pl.pallas_call(
        kernel,
        out_shape=jax.ShapeDtypeStruct((N, D), jnp.float32),
        grid_spec=pltpu.PrefetchScalarGridSpec(
            num_scalar_prefetch=3,
            grid=(total,),
            in_specs=[
                pl.BlockSpec((1, tm, tk), adj_map),   # packed adj block (bf16)
                pl.BlockSpec((K, D), emb_map),        # whole embeds table (bf16)
            ],
            out_specs=pl.BlockSpec((tm, D), out_map),
        ),
        # Footprint at the demo geometry is ~3 MiB, far below the default
        # scoped-VMEM limit on every generation; raise vmem_limit_bytes only
        # when keeping much larger embeds tables resident.
        compiler_params=pltpu.CompilerParams(
            dimension_semantics=("arbitrary",),
        ),
        cost_estimate=pl.CostEstimate(
            flops=2 * total * tm * tk * D,
            transcendentals=0,
            bytes_accessed=total * tm * tk * 2 + K * D * 2 + N * D * 4,
        ),
    )(row_dev, col_dev, first_dev, adj_packed, emb_bf)


# -------------------------------- Demo -------------------------------------
if __name__ == "__main__":
    key = jax.random.PRNGKey(0)
    k_w, k_blk, k_val, k_mask, k_emb = jax.random.split(key, 5)

    N, latdim = 2048, 128   # nodes (users + items), embedding dim
    tm = tk = 512
    nb = N // tm

    # GCNLayer.__init__: W = xavier_uniform(latdim, latdim)  (unused in forward)
    bound = math.sqrt(6.0 / (latdim + latdim))
    W = jax.random.uniform(k_w, (latdim, latdim), jnp.float32, -bound, bound)

    # Block-structured sparse, row-normalized adjacency (dense layout only for
    # demo construction; the kernel only stores / DMAs the nonzero blocks).
    blk_mask = jax.random.uniform(k_blk, (nb, nb)) < 0.5
    blk_mask = jnp.logical_or(blk_mask, jnp.eye(nb, dtype=bool))   # no empty rows
    elem_blk = jnp.repeat(jnp.repeat(blk_mask, tm, axis=0), tk, axis=1)
    raw = jax.random.uniform(k_val, (N, N), jnp.float32)
    elem_mask = jax.random.uniform(k_mask, (N, N)) < 0.05
    adj_unnorm = raw * elem_mask.astype(jnp.float32) * elem_blk.astype(jnp.float32)
    deg = jnp.maximum(adj_unnorm.sum(axis=1, keepdims=True), 1e-6)
    adj = (adj_unnorm / deg).astype(jnp.float32)

    embeds = jax.random.normal(k_emb, (N, latdim), jnp.float32)

    out = jax.block_until_ready(gcn_layer_forward(adj, embeds, tm=tm, tk=tk))

    # Exact reference of what the kernel computes (bf16 operands, f32 accum).
    ref_bf16 = jnp.dot(adj.astype(jnp.bfloat16), embeds.astype(jnp.bfloat16),
                       preferred_element_type=jnp.float32)
    # Original f32 spmm reference (loose tolerance due to bf16 operand cast).
    ref_f32 = adj @ embeds

    assert out.shape == (N, latdim)
    assert jnp.allclose(out, ref_bf16, atol=2e-3, rtol=2e-3), "bf16 reference mismatch"
    assert jnp.allclose(out, ref_f32, atol=5e-2, rtol=5e-2), "f32 reference mismatch"

    print("KERNEL_OK")
</pallas_src>

<mosaic_0001>
module attributes {stable_mosaic.version = 11 : i64} {
  func.func @_block_spmm_kernel(%arg0: i32, %arg1: memref<12xi32, #tpu.memory_space<smem>>, %arg2: memref<12xi32, #tpu.memory_space<smem>>, %arg3: memref<12xi32, #tpu.memory_space<smem>>, %arg4: memref<1x512x512xbf16, #tpu.memory_space<vmem>>, %arg5: memref<2048x128xbf16, #tpu.memory_space<vmem>>, %arg6: memref<512x128xf32, #tpu.memory_space<vmem>>) attributes {dimension_semantics = [#tpu.dimension_semantics<arbitrary>], iteration_bounds = array<i64: 12>, scalar_prefetch = 3 : i64, scratch_operands = 0 : i64, tpu.core_type = #tpu.core_type<tc>, window_params = [{transform_indices = @transform_0, window_bounds = array<i64: 1, 512, 512>}, {pipeline_mode = #tpu.pipeline_mode<synchronous>, transform_indices = @transform_1, window_bounds = array<i64: 2048, 128>}, {transform_indices = @transform_2, window_bounds = array<i64: 512, 128>}]} {
    %0 = arith.index_cast %arg0 : i32 to index
    %1 = memref.load %arg3[%0] : memref<12xi32, #tpu.memory_space<smem>>
    %c1_i32 = arith.constant 1 : i32
    %2 = arith.cmpi eq, %1, %c1_i32 : i32
    %3 = arith.extui %2 : i1 to i32
    %c0_i32 = arith.constant 0 : i32
    %4 = arith.cmpi ne, %3, %c0_i32 : i32
    scf.if %4 {
      %cst_7 = arith.constant 0.000000e+00 : f32
      %17 = vector.broadcast %cst_7 : f32 to vector<512x128xf32>
      %c0_8 = arith.constant 0 : index
      %c0_9 = arith.constant 0 : index
      %18 = vector.load %arg6[%c0_8, %c0_9] : memref<512x128xf32, #tpu.memory_space<vmem>>, vector<512x128xf32>
      tpu.vector_store %arg6[%c0_8, %c0_9], %17 {strides = array<i32>} : memref<512x128xf32, #tpu.memory_space<vmem>>, vector<512x128xf32>,
    } else {
    }
    %5 = arith.index_cast %arg0 : i32 to index
    %6 = memref.load %arg2[%5] : memref<12xi32, #tpu.memory_space<smem>>
    %c512_i32 = arith.constant 512 : i32
    %7 = arith.muli %6, %c512_i32 : i32
    %8 = tpu.assume_multiple %7, 512 : i32
    %c0 = arith.constant 0 : index
    %c0_0 = arith.constant 0 : index
    %9 = vector.load %arg6[%c0, %c0_0] : memref<512x128xf32, #tpu.memory_space<vmem>>, vector<512x128xf32>
    %c0_1 = arith.constant 0 : index
    %c0_2 = arith.constant 0 : index
    %c0_3 = arith.constant 0 : index
    %10 = vector.load %arg4[%c0_1, %c0_2, %c0_3] : memref<1x512x512xbf16, #tpu.memory_space<vmem>>, vector<1x512x512xbf16>
    %11 = vector.shape_cast %10 : vector<1x512x512xbf16> to vector<512x512xbf16>
    %12 = arith.index_cast %8 : i32 to index
    %c0_4 = arith.constant 0 : index
    %13 = vector.load %arg5[%12, %c0_4] : memref<2048x128xbf16, #tpu.memory_space<vmem>>, vector<512x128xbf16>
    %cst = arith.constant dense<0.000000e+00> : vector<512x128xf32>
    %14 = tpu.matmul %11, %13, %cst {dimension_numbers = #tpu.dot_dimension_numbers<[1], [0], [0], [1], [0, 0, 1, 1], [], []>} : vector<512x512xbf16>, vector<512x128xbf16>, vector<512x128xf32> -> vector<512x128xf32>
    %15 = arith.addf %9, %14 : vector<512x128xf32>
    %c0_5 = arith.constant 0 : index
    %c0_6 = arith.constant 0 : index
    %16 = vector.load %arg6[%c0_5, %c0_6] : memref<512x128xf32, #tpu.memory_space<vmem>>, vector<512x128xf32>
    tpu.vector_store %arg6[%c0_5, %c0_6], %15 {strides = array<i32>} : memref<512x128xf32, #tpu.memory_space<vmem>>, vector<512x128xf32>,
    return
  }
  func.func @transform_0(%arg0: i32, %arg1: memref<12xi32, #tpu.memory_space<smem>>, %arg2: memref<12xi32, #tpu.memory_space<smem>>, %arg3: memref<12xi32, #tpu.memory_space<smem>>) -> (i32, i32, i32) {
    %c0_i32 = arith.constant 0 : i32
    %c0_i32_0 = arith.constant 0 : i32
    %c0_i32_1 = arith.constant 0 : i32
    return %arg0, %c0_i32, %c0_i32_0 : i32, i32, i32
  }
  func.func @transform_1(%arg0: i32, %arg1: memref<12xi32, #tpu.memory_space<smem>>, %arg2: memref<12xi32, #tpu.memory_space<smem>>, %arg3: memref<12xi32, #tpu.memory_space<smem>>) -> (i32, i32) {
    %c0_i32 = arith.constant 0 : i32
    %c0_i32_0 = arith.constant 0 : i32
    %c0_i32_1 = arith.constant 0 : i32
    return %c0_i32, %c0_i32_0 : i32, i32
  }
  func.func @transform_2(%arg0: i32, %arg1: memref<12xi32, #tpu.memory_space<smem>>, %arg2: memref<12xi32, #tpu.memory_space<smem>>, %arg3: memref<12xi32, #tpu.memory_space<smem>>) -> (i32, i32) {
    %0 = arith.index_cast %arg0 : i32 to index
    %1 = memref.load %arg1[%0] : memref<12xi32, #tpu.memory_space<smem>>
    %c0_i32 = arith.constant 0 : i32
    %c0_i32_0 = arith.constant 0 : i32
    return %1, %c0_i32 : i32, i32
  }
}

</mosaic_0001>

<llo_original>
// kernel: tpu_custom_call.1
$region0: #{tpu_custom_call.1}
  #allocation0 [shape = 'u32[]', space=smem, size = 0x4, offset = 0x4, fixed_abs, tag = 'smem constant byte address 0x4 - core index']
  #allocation1 [shape = 'u32[72,128]{1,0:T(1,128)}', space=vmem, size = 0x9000, scoped, tag = 'internal scratch']
  #allocation2 [shape = 's32[1]{0}', space=sflag, size = 0x4, scoped, tag = 'scoped memory for tpu_custom_call.1']
  #allocation3 [shape = 'u8[512]{0}', space=smem, size = 0x200, scoped, tag = 'prefetched SMEM operand 0']
  #allocation4 [shape = 'u8[512]{0}', space=smem, size = 0x200, scoped, tag = 'prefetched SMEM operand 1']
  #allocation5 [shape = 'u8[512]{0}', space=smem, size = 0x200, scoped, tag = 'prefetched SMEM operand 2']
  %s0 = inlined_call_operand.hbm [shape: s32[12], index: 0, kind: input, shape index: {}]
  %s1 = inlined_call_operand.hbm [shape: s32[12], index: 1, kind: input, shape index: {}]
  %s2 = inlined_call_operand.hbm [shape: s32[12], index: 2, kind: input, shape index: {}]
  %s3 = inlined_call_operand.hbm [shape: bf16[12,512,512], index: 3, kind: input, shape index: {}]
  %s4 = inlined_call_operand.hbm [shape: bf16[2048,128], index: 4, kind: input, shape index: {}]
  %s5 = inlined_call_operand.hbm [shape: f32[2048,128], index: 5, kind: output, shape index: {}]
  %s6 = sld [smem:[#allocation0]]
  $region53: #{tpu_custom_call.1} parent=0
    _
  %s8 = ssub.s32 1, %s6
  %s9 = scalar_select 0, %s8, %s6
  %s11 = sshll.u32 %s0, 4
  %s12 = int_to_ptr.hbm [resolvable:$true] %s11
  %14 = dma.hbm_to_smem %s12, 16, [#allocation3], [#allocation2]
  %s16 = sshll.u32 %s1, 4
  %s17 = int_to_ptr.hbm [resolvable:$true] %s16
  %19 = dma.hbm_to_smem %s17, 16, [#allocation4], [#allocation2]
  %s21 = sshll.u32 %s2, 4
  %s22 = int_to_ptr.hbm [resolvable:$true] %s21
  %24 = dma.hbm_to_smem %s22, 16, [#allocation5], [#allocation2]
  %26 = dma.done [#allocation2], 48
  %27 = sfence
  $region1: #{tpu_custom_call.1} parent=0
    #allocation6 [shape = 'u8[1048576]{0}', space=vmem, size = 0x100000, scoped, tag = 'input window, operand 3']
    #allocation7 [shape = 's32[2]{0}', space=sflag, size = 0x8, scoped, tag = 'scoped memory for tpu_custom_call.1']
    #allocation8 [shape = 's32[2]{0}', space=sflag, size = 0x8, scoped, tag = 'scoped memory for tpu_custom_call.1']
    #allocation9 [shape = 'u8[524288]{0}', space=vmem, size = 0x80000, scoped, tag = 'input window, operand 4, single buffered']
    #allocation10 [shape = 's32[1]{0}', space=sflag, size = 0x4, scoped, tag = 'scoped memory for tpu_custom_call.1']
    #allocation11 [shape = 'u8[524288]{0}', space=vmem, size = 0x80000, scoped, tag = 'output window, operand 0']
    %28 = vsyncpa [#allocation7], 0
    %s29 = scalar_lea.sflag [#allocation7], 1
    %30 = vsyncpa %s29, 0
    %31 = vsyncpa [#allocation10], 0
    %32 = vsyncpa [#allocation8], 0
    %s33 = scalar_lea.sflag [#allocation8], 1
    %34 = vsyncpa %s33, 0
    loop: start=0, step=1, limit=14
    $region2: #{tpu_custom_call.1} parent=1 // loop_pre_header
      _
    $region3: #{tpu_custom_call.1} parent=1 // loop_header
      %s36 = sphi 0, %s40
      %p37 = scmp.ge.s32.totalorder %s36, 14
      %s46 = sphi 0, %s48
      %s49 = sphi 0, %s46
      %s50 = sphi 0, %s49
      %s66 = sphi 0, %s50
      %s70 = sphi 0, %s70
      %s72 = sphi 0, %s70
      %s73 = sphi 0, %s72
      %s87 = sphi 0, %s73
      %s95 = sphi 0, %s97
      %s98 = sphi 0, %s95
      %s99 = sphi 0, %s98
      %s115 = sphi 0, %s99
    $region4: #{tpu_custom_call.1} parent=1 // loop_header_branch
      %39 = sbr.rel (%p37) target = $region8
    $region5: #{tpu_custom_call.1} parent=1 // loop_body
      %s41 = ssub.s32 %s36, 1
      %s42 = ssub.s32 %s36, 2
      %s43 = sadd.s32 %s36, 1
      %s44 = ssub.s32 %s36, %s43
      %p45 = scmp.eq.s32.totalorder %s44, 0
      %s47 = sadd.s32 %s46, 1
      %s48 = scalar_select %p45, %s46, %s47
      %p51 = pneg %p45
      %p52 = scmp.eq.s32.totalorder %s36, 11
      %p53 = por %p51, %p52
      %p54 = scmp.ne.s32.totalorder %s46, %s49
      %p55 = scmp.eq.s32.totalorder %s36, 0
      %p56 = por %p54, %p55
      %p57 = scmp.ne.s32.totalorder %s46, %s49
      %p58 = scmp.eq.s32.totalorder %s41, 11
      %p59 = por %p57, %p58
      %p60 = scmp.ne.s32.totalorder %s49, %s50
      %p61 = scmp.eq.s32.totalorder %s41, 0
      %p62 = por %p60, %p61
      %p63 = scmp.ne.s32.totalorder %s49, %s50
      %p64 = scmp.eq.s32.totalorder %s42, 11
      %p65 = por %p63, %p64
      %p67 = scmp.ne.s32.totalorder %s50, %s66
      %p68 = scmp.eq.s32.totalorder %s42, 0
      %p69 = por %p67, %p68
      %s71 = sadd.s32 %s70, 1
      %p74 = scmp.eq.s32.totalorder %s36, 11
      %p75 = scmp.ne.s32.totalorder %s70, %s72
      %p76 = scmp.eq.s32.totalorder %s36, 0
      %p77 = por %p75, %p76
      %p78 = scmp.ne.s32.totalorder %s70, %s72
      %p79 = scmp.eq.s32.totalorder %s41, 11
      %p80 = por %p78, %p79
      %p81 = scmp.ne.s32.totalorder %s72, %s73
      %p82 = scmp.eq.s32.totalorder %s41, 0
      %p83 = por %p81, %p82
      %p84 = scmp.ne.s32.totalorder %s72, %s73
      %p85 = scmp.eq.s32.totalorder %s42, 11
      %p86 = por %p84, %p85
      %p88 = scmp.ne.s32.totalorder %s73, %s87
      %p89 = scmp.eq.s32.totalorder %s42, 0
      %p90 = por %p88, %p89
      %s91 = sld [smem:[#allocation3 + %s36]]
      %s92 = sld [smem:[#allocation3 + %s43]]
      %s93 = ssub.s32 %s91, %s92
      %p94 = scmp.eq.s32.totalorder %s93, 0
      %s96 = sadd.s32 %s95, 1
      %s97 = scalar_select %p94, %s95, %s96
      %p100 = pneg %p94
      %p101 = scmp.eq.s32.totalorder %s36, 11
      %p102 = por %p100, %p101
      %p103 = scmp.ne.s32.totalorder %s95, %s98
      %p104 = scmp.eq.s32.totalorder %s36, 0
      %p105 = por %p103, %p104
      %p106 = scmp.ne.s32.totalorder %s95, %s98
      %p107 = scmp.eq.s32.totalorder %s41, 11
      %p108 = por %p106, %p107
      %p109 = scmp.ne.s32.totalorder %s98, %s99
      %p110 = scmp.eq.s32.totalorder %s41, 0
      %p111 = por %p109, %p110
      %p112 = scmp.ne.s32.totalorder %s98, %s99
      %p113 = scmp.eq.s32.totalorder %s42, 11
      %p114 = por %p112, %p113
      %p116 = scmp.ne.s32.totalorder %s99, %s115
      %p117 = scmp.eq.s32.totalorder %s42, 0
      %p118 = por %p116, %p117
      %p119 = scmp.le.s32.totalorder 1, %s36
      %p120 = scmp.lt.s32.totalorder %s36, 13
      %p121 = pnand %p119, %p120
      %p122 = pneg %p121
      // Predicated region
      $region9: #{tpu_custom_call.1} parent=5 // pred_check
        _
      $region10: #{tpu_custom_call.1} parent=5 // pred_check_branch
        %124 = sbr.rel (%p121) target = $region12
      $region11: #{tpu_custom_call.1} parent=5 // pred_region
        %s125 = ssub.s32 %s36, 1
        // Predicated region
        $region13: #{tpu_custom_call.1} parent=11 // pred_check
          %p126 = pneg %p83
        $region14: #{tpu_custom_call.1} parent=11 // pred_check_branch
          %128 = sbr.rel (%p126) target = $region16
        $region15: #{tpu_custom_call.1} parent=11 // pred_region
          %130 = vsyncadd [#allocation10], 0
          %s131 = sshll.u32 %s4, 4
          %s132 = int_to_ptr.hbm [resolvable:$true] %s131
          %s133 = sshll.u32 [#allocation9], 4
          %s134 = int_to_ptr.vmem [resolvable:$true] %s133
          %139 = dma.hbm_to_vmem [thread:$0]  %s132, 16384, %s134, [#allocation10], 64, 64, 4
        $region16: #{tpu_custom_call.1} parent=11 // pred_fallthru
          _
      $region12: #{tpu_custom_call.1} parent=5 // pred_fallthru
        _
      %p140 = scmp.lt.s32.totalorder %s36, 12
      // Predicated region
      $region17: #{tpu_custom_call.1} parent=5 // pred_check
        %p141 = pneg %p140
      $region18: #{tpu_custom_call.1} parent=5 // pred_check_branch
        %143 = sbr.rel (%p141) target = $region20
      $region19: #{tpu_custom_call.1} parent=5 // pred_region
        // Predicated region
        $region21: #{tpu_custom_call.1} parent=19 // pred_check
          %p144 = pneg %p56
        $region22: #{tpu_custom_call.1} parent=19 // pred_check_branch
          %146 = sbr.rel (%p144) target = $region24
        $region23: #{tpu_custom_call.1} parent=19 // pred_region
          %s147 = sand.u32 %s46, 1
          %s148 = scalar_lea.sflag [#allocation7], %s147
          %s149 = sand.u32 %s46, 1
          %s150 = smul.addr %s149, 1024
          %s151 = scalar_lea.vmem [#allocation6], %s150
          %153 = vsyncadd %s148, 0
          %s154 = smul.addr %s36, 256
          %s155 = smul.addr %s154, 4
          %s156 = scalar_lea.hbm %s3, %s155
          %s157 = sshll.u32 %s156, 4
          %s158 = int_to_ptr.hbm [resolvable:$true] %s157
          %s159 = sshll.u32 %s151, 4
          %s160 = int_to_ptr.vmem [resolvable:$true] %s159
          %165 = dma.hbm_to_vmem [thread:$0]  %s158, 16384, %s160, %s148, 256, 256, 16
        $region24: #{tpu_custom_call.1} parent=19 // pred_fallthru
          _
      $region20: #{tpu_custom_call.1} parent=5 // pred_fallthru
        _
      %p166 = scmp.le.s32.totalorder 1, %s36
      %p167 = scmp.lt.s32.totalorder %s36, 13
      %p168 = pnand %p166, %p167
      %p169 = pneg %p168
      // Predicated region
      $region25: #{tpu_custom_call.1} parent=5 // pred_check
        _
      $region26: #{tpu_custom_call.1} parent=5 // pred_check_branch
        %171 = sbr.rel (%p168) target = $region28
      $region27: #{tpu_custom_call.1} parent=5 // pred_region
        %s172 = ssub.s32 %s36, 1
        %s173 = sand.u32 %s49, 1
        %s174 = scalar_lea.sflag [#allocation7], %s173
        %s175 = sand.u32 %s49, 1
        %s176 = smul.addr %s175, 1024
        %s177 = scalar_lea.vmem [#allocation6], %s176
        // Predicated region
        $region29: #{tpu_custom_call.1} parent=27 // pred_check
          %p178 = pneg %p62
        $region30: #{tpu_custom_call.1} parent=27 // pred_check_branch
          %180 = sbr.rel (%p178) target = $region32
        $region31: #{tpu_custom_call.1} parent=27 // pred_region
          %182 = dma.done %s174, 16384
        $region32: #{tpu_custom_call.1} parent=27 // pred_fallthru
          _
        // Predicated region
        $region33: #{tpu_custom_call.1} parent=27 // pred_check
          %p183 = pneg %p83
        $region34: #{tpu_custom_call.1} parent=27 // pred_check_branch
          %185 = sbr.rel (%p183) target = $region36
        $region35: #{tpu_custom_call.1} parent=27 // pred_region
          %187 = dma.done [#allocation10], 16384
        $region36: #{tpu_custom_call.1} parent=27 // pred_fallthru
          _
        %s188 = sand.u32 %s49, 1
        %s189 = scalar_lea.sflag [#allocation7], %s188
        %s190 = sand.u32 %s49, 1
        %s191 = smul.addr %s190, 1024
        %s192 = scalar_lea.vmem [#allocation6], %s191
        %p193 = pneg %p62
        %p194 = pneg %p59
        %p195 = pneg %p83
        %p196 = pneg %p80
        %p197 = pneg %p111
        %p198 = pneg %p108
        %s199 = sand.u32 %s98, 1
        %s200 = scalar_lea.sflag [#allocation8], %s199
        %s201 = sand.u32 %s98, 1
        %s202 = smul.addr %s201, 512
        %s203 = scalar_lea.vmem [#allocation11], %s202
        %s204 = sld [smem:[#allocation3 + %s41]]
        %s205 = smul.u32 64, %s204
        %s206 = sld [smem:[#allocation5 + %s41]]
        %p207 = scmp.eq.s32.totalorder %s206, 1
        // Predicated region
        $region37: #{tpu_custom_call.1} parent=27 // pred_check
          %p208 = pneg %p207
        $region38: #{tpu_custom_call.1} parent=27 // pred_check_branch
          %210 = sbr.rel (%p208) target = $region40
        $region39: #{tpu_custom_call.1} parent=27 // pred_region
          %211 = vst [vmem:[%s203] sm:$0xff] 0.0
          %212 = vst [vmem:[%s203 + $0x8] sm:$0xff] 0.0
          %213 = vst [vmem:[%s203 + $0x10] sm:$0xff] 0.0
          %214 = vst [vmem:[%s203 + $0x18] sm:$0xff] 0.0
          %215 = vst [vmem:[%s203 + $0x20] sm:$0xff] 0.0
          %216 = vst [vmem:[%s203 + $0x28] sm:$0xff] 0.0
          %217 = vst [vmem:[%s203 + $0x30] sm:$0xff] 0.0
          %218 = vst [vmem:[%s203 + $0x38] sm:$0xff] 0.0
          %219 = vst [vmem:[%s203 + $0x40] sm:$0xff] 0.0
          %220 = vst [vmem:[%s203 + $0x48] sm:$0xff] 0.0
          %221 = vst [vmem:[%s203 + $0x50] sm:$0xff] 0.0
          %222 = vst [vmem:[%s203 + $0x58] sm:$0xff] 0.0
          %223 = vst [vmem:[%s203 + $0x60] sm:$0xff] 0.0
          %224 = vst [vmem:[%s203 + $0x68] sm:$0xff] 0.0
          %225 = vst [vmem:[%s203 + $0x70] sm:$0xff] 0.0
          %226 = vst [vmem:[%s203 + $0x78] sm:$0xff] 0.0
          %227 = vst [vmem:[%s203 + $0x80] sm:$0xff] 0.0
          %228 = vst [vmem:[%s203 + $0x88] sm:$0xff] 0.0
          %229 = vst [vmem:[%s203 + $0x90] sm:$0xff] 0.0
          %230 = vst [vmem:[%s203 + $0x98] sm:$0xff] 0.0
          %231 = vst [vmem:[%s203 + $0xa0] sm:$0xff] 0.0
          %232 = vst [vmem:[%s203 + $0xa8] sm:$0xff] 0.0
          %233 = vst [vmem:[%s203 + $0xb0] sm:$0xff] 0.0
          %234 = vst [vmem:[%s203 + $0xb8] sm:$0xff] 0.0
          %235 = vst [vmem:[%s203 + $0xc0] sm:$0xff] 0.0
          %236 = vst [vmem:[%s203 + $0xc8] sm:$0xff] 0.0
          %237 = vst [vmem:[%s203 + $0xd0] sm:$0xff] 0.0
          %238 = vst [vmem:[%s203 + $0xd8] sm:$0xff] 0.0
          %239 = vst [vmem:[%s203 + $0xe0] sm:$0xff] 0.0
          %240 = vst [vmem:[%s203 + $0xe8] sm:$0xff] 0.0
          %241 = vst [vmem:[%s203 + $0xf0] sm:$0xff] 0.0
          %242 = vst [vmem:[%s203 + $0xf8] sm:$0xff] 0.0
          %243 = vst [vmem:[%s203 + $0x100] sm:$0xff] 0.0
          %244 = vst [vmem:[%s203 + $0x108] sm:$0xff] 0.0
          %245 = vst [vmem:[%s203 + $0x110] sm:$0xff] 0.0
          %246 = vst [vmem:[%s203 + $0x118] sm:$0xff] 0.0
          %247 = vst [vmem:[%s203 + $0x120] sm:$0xff] 0.0
          %248 = vst [vmem:[%s203 + $0x128] sm:$0xff] 0.0
          %249 = vst [vmem:[%s203 + $0x130] sm:$0xff] 0.0
          %250 = vst [vmem:[%s203 + $0x138] sm:$0xff] 0.0
          %251 = vst [vmem:[%s203 + $0x140] sm:$0xff] 0.0
          %252 = vst [vmem:[%s203 + $0x148] sm:$0xff] 0.0
          %253 = vst [vmem:[%s203 + $0x150] sm:$0xff] 0.0
          %254 = vst [vmem:[%s203 + $0x158] sm:$0xff] 0.0
          %255 = vst [vmem:[%s203 + $0x160] sm:$0xff] 0.0
          %256 = vst [vmem:[%s203 + $0x168] sm:$0xff] 0.0
          %257 = vst [vmem:[%s203 + $0x170] sm:$0xff] 0.0
          %258 = vst [vmem:[%s203 + $0x178] sm:$0xff] 0.0
          %259 = vst [vmem:[%s203 + $0x180] sm:$0xff] 0.0
          %260 = vst [vmem:[%s203 + $0x188] sm:$0xff] 0.0
          %261 = vst [vmem:[%s203 + $0x190] sm:$0xff] 0.0
          %262 = vst [vmem:[%s203 + $0x198] sm:$0xff] 0.0
          %263 = vst [vmem:[%s203 + $0x1a0] sm:$0xff] 0.0
          %264 = vst [vmem:[%s203 + $0x1a8] sm:$0xff] 0.0
          %265 = vst [vmem:[%s203 + $0x1b0] sm:$0xff] 0.0
          %266 = vst [vmem:[%s203 + $0x1b8] sm:$0xff] 0.0
          %267 = vst [vmem:[%s203 + $0x1c0] sm:$0xff] 0.0
          %268 = vst [vmem:[%s203 + $0x1c8] sm:$0xff] 0.0
          %269 = vst [vmem:[%s203 + $0x1d0] sm:$0xff] 0.0
          %270 = vst [vmem:[%s203 + $0x1d8] sm:$0xff] 0.0
          %271 = vst [vmem:[%s203 + $0x1e0] sm:$0xff] 0.0
          %272 = vst [vmem:[%s203 + $0x1e8] sm:$0xff] 0.0
          %273 = vst [vmem:[%s203 + $0x1f0] sm:$0xff] 0.0
          %274 = vst [vmem:[%s203 + $0x1f8] sm:$0xff] 0.0
        $region40: #{tpu_custom_call.1} parent=27 // pred_fallthru
          _
        %s275 = sld [smem:[#allocation4 + %s41]]
        %s276 = smul.u32 %s275, 512
        %v277 = vld [vmem:[%s203] sm:$0xff]
        %v278 = vld [vmem:[%s203 + $0x8] sm:$0xff]
        %v279 = vld [vmem:[%s203 + $0x10] sm:$0xff]
        %v280 = vld [vmem:[%s203 + $0x18] sm:$0xff]
        %v281 = vld [vmem:[%s203 + $0x20] sm:$0xff]
        %v282 = vld [vmem:[%s203 + $0x28] sm:$0xff]
        %v283 = vld [vmem:[%s203 + $0x30] sm:$0xff]
        %v284 = vld [vmem:[%s203 + $0x38] sm:$0xff]
        %v285 = vld [vmem:[%s203 + $0x40] sm:$0xff]
        %v286 = vld [vmem:[%s203 + $0x48] sm:$0xff]
        %v287 = vld [vmem:[%s203 + $0x50] sm:$0xff]
        %v288 = vld [vmem:[%s203 + $0x58] sm:$0xff]
        %v289 = vld [vmem:[%s203 + $0x60] sm:$0xff]
        %v290 = vld [vmem:[%s203 + $0x68] sm:$0xff]
        %v291 = vld [vmem:[%s203 + $0x70] sm:$0xff]
        %v292 = vld [vmem:[%s203 + $0x78] sm:$0xff]
        %v293 = vld [vmem:[%s203 + $0x80] sm:$0xff]
        %v294 = vld [vmem:[%s203 + $0x88] sm:$0xff]
        %v295 = vld [vmem:[%s203 + $0x90] sm:$0xff]
        %v296 = vld [vmem:[%s203 + $0x98] sm:$0xff]
        %v297 = vld [vmem:[%s203 + $0xa0] sm:$0xff]
        %v298 = vld [vmem:[%s203 + $0xa8] sm:$0xff]
        %v299 = vld [vmem:[%s203 + $0xb0] sm:$0xff]
        %v300 = vld [vmem:[%s203 + $0xb8] sm:$0xff]
        %v301 = vld [vmem:[%s203 + $0xc0] sm:$0xff]
        %v302 = vld [vmem:[%s203 + $0xc8] sm:$0xff]
        %v303 = vld [vmem:[%s203 + $0xd0] sm:$0xff]
        %v304 = vld [vmem:[%s203 + $0xd8] sm:$0xff]
        %v305 = vld [vmem:[%s203 + $0xe0] sm:$0xff]
        %v306 = vld [vmem:[%s203 + $0xe8] sm:$0xff]
        %v307 = vld [vmem:[%s203 + $0xf0] sm:$0xff]
        %v308 = vld [vmem:[%s203 + $0xf8] sm:$0xff]
        %v309 = vld [vmem:[%s203 + $0x100] sm:$0xff]
        %v310 = vld [vmem:[%s203 + $0x108] sm:$0xff]
        %v311 = vld [vmem:[%s203 + $0x110] sm:$0xff]
        %v312 = vld [vmem:[%s203 + $0x118] sm:$0xff]
        %v313 = vld [vmem:[%s203 + $0x120] sm:$0xff]
        %v314 = vld [vmem:[%s203 + $0x128] sm:$0xff]
        %v315 = vld [vmem:[%s203 + $0x130] sm:$0xff]
        %v316 = vld [vmem:[%s203 + $0x138] sm:$0xff]
        %v317 = vld [vmem:[%s203 + $0x140] sm:$0xff]
        %v318 = vld [vmem:[%s203 + $0x148] sm:$0xff]
        %v319 = vld [vmem:[%s203 + $0x150] sm:$0xff]
        %v320 = vld [vmem:[%s203 + $0x158] sm:$0xff]
        %v321 = vld [vmem:[%s203 + $0x160] sm:$0xff]
        %v322 = vld [vmem:[%s203 + $0x168] sm:$0xff]
        %v323 = vld [vmem:[%s203 + $0x170] sm:$0xff]
        %v324 = vld [vmem:[%s203 + $0x178] sm:$0xff]
        %v325 = vld [vmem:[%s203 + $0x180] sm:$0xff]
        %v326 = vld [vmem:[%s203 + $0x188] sm:$0xff]
        %v327 = vld [vmem:[%s203 + $0x190] sm:$0xff]
        %v328 = vld [vmem:[%s203 + $0x198] sm:$0xff]
        %v329 = vld [vmem:[%s203 + $0x1a0] sm:$0xff]
        %v330 = vld [vmem:[%s203 + $0x1a8] sm:$0xff]
        %v331 = vld [vmem:[%s203 + $0x1b0] sm:$0xff]
        %v332 = vld [vmem:[%s203 + $0x1b8] sm:$0xff]
        %v333 = vld [vmem:[%s203 + $0x1c0] sm:$0xff]
        %v334 = vld [vmem:[%s203 + $0x1c8] sm:$0xff]
        %v335 = vld [vmem:[%s203 + $0x1d0] sm:$0xff]
        %v336 = vld [vmem:[%s203 + $0x1d8] sm:$0xff]
        %v337 = vld [vmem:[%s203 + $0x1e0] sm:$0xff]
        %v338 = vld [vmem:[%s203 + $0x1e8] sm:$0xff]
        %v339 = vld [vmem:[%s203 + $0x1f0] sm:$0xff]
        %v340 = vld [vmem:[%s203 + $0x1f8] sm:$0xff]
        %v341 = vld [vmem:[%s177] sm:$0xff]
        %v342 = vld [vmem:[%s177 + $0x8] sm:$0xff]
        %v343 = vld [vmem:[%s177 + $0x10] sm:$0xff]
        %v344 = vld [vmem:[%s177 + $0x18] sm:$0xff]
        %v345 = vld [vmem:[%s177 + $0x20] sm:$0xff]
        %v346 = vld [vmem:[%s177 + $0x28] sm:$0xff]
        %v347 = vld [vmem:[%s177 + $0x30] sm:$0xff]
        %v348 = vld [vmem:[%s177 + $0x38] sm:$0xff]
        %v349 = vld [vmem:[%s177 + $0x40] sm:$0xff]
        %v350 = vld [vmem:[%s177 + $0x48] sm:$0xff]
        %v351 = vld [vmem:[%s177 + $0x50] sm:$0xff]
        %v352 = vld [vmem:[%s177 + $0x58] sm:$0xff]
        %v353 = vld [vmem:[%s177 + $0x60] sm:$0xff]
        %v354 = vld [vmem:[%s177 + $0x68] sm:$0xff]
        %v355 = vld [vmem:[%s177 + $0x70] sm:$0xff]
        %v356 = vld [vmem:[%s177 + $0x78] sm:$0xff]
        %v357 = vld [vmem:[%s177 + $0x80] sm:$0xff]
        %v358 = vld [vmem:[%s177 + $0x88] sm:$0xff]
        %v359 = vld [vmem:[%s177 + $0x90] sm:$0xff]
        %v360 = vld [vmem:[%s177 + $0x98] sm:$0xff]
        %v361 = vld [vmem:[%s177 + $0xa0] sm:$0xff]
        %v362 = vld [vmem:[%s177 + $0xa8] sm:$0xff]
        %v363 = vld [vmem:[%s177 + $0xb0] sm:$0xff]
        %v364 = vld [vmem:[%s177 + $0xb8] sm:$0xff]
        %v365 = vld [vmem:[%s177 + $0xc0] sm:$0xff]
        %v366 = vld [vmem:[%s177 + $0xc8] sm:$0xff]
        %v367 = vld [vmem:[%s177 + $0xd0] sm:$0xff]
        %v368 = vld [vmem:[%s177 + $0xd8] sm:$0xff]
        %v369 = vld [vmem:[%s177 + $0xe0] sm:$0xff]
        %v370 = vld [vmem:[%s177 + $0xe8] sm:$0xff]
        %v371 = vld [vmem:[%s177 + $0xf0] sm:$0xff]
        %v372 = vld [vmem:[%s177 + $0xf8] sm:$0xff]
        %v373 = vld [vmem:[%s177 + $0x100] sm:$0xff]
        %v374 = vld [vmem:[%s177 + $0x108] sm:$0xff]
        %v375 = vld [vmem:[%s177 + $0x110] sm:$0xff]
        %v376 = vld [vmem:[%s177 + $0x118] sm:$0xff]
        %v377 = vld [vmem:[%s177 + $0x120] sm:$0xff]
        %v378 = vld [vmem:[%s177 + $0x128] sm:$0xff]
        %v379 = vld [vmem:[%s177 + $0x130] sm:$0xff]
        %v380 = vld [vmem:[%s177 + $0x138] sm:$0xff]
        %v381 = vld [vmem:[%s177 + $0x140] sm:$0xff]
        %v382 = vld [vmem:[%s177 + $0x148] sm:$0xff]
        %v383 = vld [vmem:[%s177 + $0x150] sm:$0xff]
        %v384 = vld [vmem:[%s177 + $0x158] sm:$0xff]
        %v385 = vld [vmem:[%s177 + $0x160] sm:$0xff]
        %v386 = vld [vmem:[%s177 + $0x168] sm:$0xff]
        %v387 = vld [vmem:[%s177 + $0x170] sm:$0xff]
        %v388 = vld [vmem:[%s177 + $0x178] sm:$0xff]
        %v389 = vld [vmem:[%s177 + $0x180] sm:$0xff]
        %v390 = vld [vmem:[%s177 + $0x188] sm:$0xff]
        %v391 = vld [vmem:[%s177 + $0x190] sm:$0xff]
        %v392 = vld [vmem:[%s177 + $0x198] sm:$0xff]
        %v393 = vld [vmem:[%s177 + $0x1a0] sm:$0xff]
        %v394 = vld [vmem:[%s177 + $0x1a8] sm:$0xff]
        %v395 = vld [vmem:[%s177 + $0x1b0] sm:$0xff]
        %v396 = vld [vmem:[%s177 + $0x1b8] sm:$0xff]
        %v397 = vld [vmem:[%s177 + $0x1c0] sm:$0xff]
        %v398 = vld [vmem:[%s177 + $0x1c8] sm:$0xff]
        %v399 = vld [vmem:[%s177 + $0x1d0] sm:$0xff]
        %v400 = vld [vmem:[%s177 + $0x1d8] sm:$0xff]
        %v401 = vld [vmem:[%s177 + $0x1e0] sm:$0xff]
        %v402 = vld [vmem:[%s177 + $0x1e8] sm:$0xff]
        %v403 = vld [vmem:[%s177 + $0x1f0] sm:$0xff]
        %v404 = vld [vmem:[%s177 + $0x1f8] sm:$0xff]
        %v405 = vld [vmem:[%s177 + $0x200] sm:$0xff]
        %v406 = vld [vmem:[%s177 + $0x208] sm:$0xff]
        %v407 = vld [vmem:[%s177 + $0x210] sm:$0xff]
        %v408 = vld [vmem:[%s177 + $0x218] sm:$0xff]
        %v409 = vld [vmem:[%s177 + $0x220] sm:$0xff]
        %v410 = vld [vmem:[%s177 + $0x228] sm:$0xff]
        %v411 = vld [vmem:[%s177 + $0x230] sm:$0xff]
        %v412 = vld [vmem:[%s177 + $0x238] sm:$0xff]
        %v413 = vld [vmem:[%s177 + $0x240] sm:$0xff]
        %v414 = vld [vmem:[%s177 + $0x248] sm:$0xff]
        %v415 = vld [vmem:[%s177 + $0x250] sm:$0xff]
        %v416 = vld [vmem:[%s177 + $0x258] sm:$0xff]
        %v417 = vld [vmem:[%s177 + $0x260] sm:$0xff]
        %v418 = vld [vmem:[%s177 + $0x268] sm:$0xff]
        %v419 = vld [vmem:[%s177 + $0x270] sm:$0xff]
        %v420 = vld [vmem:[%s177 + $0x278] sm:$0xff]
        %v421 = vld [vmem:[%s177 + $0x280] sm:$0xff]
        %v422 = vld [vmem:[%s177 + $0x288] sm:$0xff]
        %v423 = vld [vmem:[%s177 + $0x290] sm:$0xff]
        %v424 = vld [vmem:[%s177 + $0x298] sm:$0xff]
        %v425 = vld [vmem:[%s177 + $0x2a0] sm:$0xff]
        %v426 = vld [vmem:[%s177 + $0x2a8] sm:$0xff]
        %v427 = vld [vmem:[%s177 + $0x2b0] sm:$0xff]
        %v428 = vld [vmem:[%s177 + $0x2b8] sm:$0xff]
        %v429 = vld [vmem:[%s177 + $0x2c0] sm:$0xff]
        %v430 = vld [vmem:[%s177 + $0x2c8] sm:$0xff]
        %v431 = vld [vmem:[%s177 + $0x2d0] sm:$0xff]
        %v432 = vld [vmem:[%s177 + $0x2d8] sm:$0xff]
        %v433 = vld [vmem:[%s177 + $0x2e0] sm:$0xff]
        %v434 = vld [vmem:[%s177 + $0x2e8] sm:$0xff]
        %v435 = vld [vmem:[%s177 + $0x2f0] sm:$0xff]
        %v436 = vld [vmem:[%s177 + $0x2f8] sm:$0xff]
        %v437 = vld [vmem:[%s177 + $0x300] sm:$0xff]
        %v438 = vld [vmem:[%s177 + $0x308] sm:$0xff]
        %v439 = vld [vmem:[%s177 + $0x310] sm:$0xff]
        %v440 = vld [vmem:[%s177 + $0x318] sm:$0xff]
        %v441 = vld [vmem:[%s177 + $0x320] sm:$0xff]
        %v442 = vld [vmem:[%s177 + $0x328] sm:$0xff]
        %v443 = vld [vmem:[%s177 + $0x330] sm:$0xff]
        %v444 = vld [vmem:[%s177 + $0x338] sm:$0xff]
        %v445 = vld [vmem:[%s177 + $0x340] sm:$0xff]
        %v446 = vld [vmem:[%s177 + $0x348] sm:$0xff]
        %v447 = vld [vmem:[%s177 + $0x350] sm:$0xff]
        %v448 = vld [vmem:[%s177 + $0x358] sm:$0xff]
        %v449 = vld [vmem:[%s177 + $0x360] sm:$0xff]
        %v450 = vld [vmem:[%s177 + $0x368] sm:$0xff]
        %v451 = vld [vmem:[%s177 + $0x370] sm:$0xff]
        %v452 = vld [vmem:[%s177 + $0x378] sm:$0xff]
        %v453 = vld [vmem:[%s177 + $0x380] sm:$0xff]
        %v454 = vld [vmem:[%s177 + $0x388] sm:$0xff]
        %v455 = vld [vmem:[%s177 + $0x390] sm:$0xff]
        %v456 = vld [vmem:[%s177 + $0x398] sm:$0xff]
        %v457 = vld [vmem:[%s177 + $0x3a0] sm:$0xff]
        %v458 = vld [vmem:[%s177 + $0x3a8] sm:$0xff]
        %v459 = vld [vmem:[%s177 + $0x3b0] sm:$0xff]
        %v460 = vld [vmem:[%s177 + $0x3b8] sm:$0xff]
        %v461 = vld [vmem:[%s177 + $0x3c0] sm:$0xff]
        %v462 = vld [vmem:[%s177 + $0x3c8] sm:$0xff]
        %v463 = vld [vmem:[%s177 + $0x3d0] sm:$0xff]
        %v464 = vld [vmem:[%s177 + $0x3d8] sm:$0xff]
        %v465 = vld [vmem:[%s177 + $0x3e0] sm:$0xff]
        %v466 = vld [vmem:[%s177 + $0x3e8] sm:$0xff]
        %v467 = vld [vmem:[%s177 + $0x3f0] sm:$0xff]
        %v468 = vld [vmem:[%s177 + $0x3f8] sm:$0xff]
        %s469 = sshra.s32 %s276, 3
        %s470 = sand.u32 %s276, 7
        %s471 = smul.addr %s469, 4
        %s472 = scalar_lea.vmem [#allocation9], %s471
        %v473 = vld [vmem:[%s472] sm:$0xf]
        %v474 = vld [vmem:[%s472 + $0x4] sm:$0xf]
        %v475 = vld [vmem:[%s472 + $0x8] sm:$0xf]
        %v476 = vld [vmem:[%s472 + $0xc] sm:$0xf]
        %v477 = vld [vmem:[%s472 + $0x10] sm:$0xf]
        %v478 = vld [vmem:[%s472 + $0x14] sm:$0xf]
        %v479 = vld [vmem:[%s472 + $0x18] sm:$0xf]
        %v480 = vld [vmem:[%s472 + $0x1c] sm:$0xf]
        %v481 = vld [vmem:[%s472 + $0x20] sm:$0xf]
        %v482 = vld [vmem:[%s472 + $0x24] sm:$0xf]
        %v483 = vld [vmem:[%s472 + $0x28] sm:$0xf]
        %v484 = vld [vmem:[%s472 + $0x2c] sm:$0xf]
        %v485 = vld [vmem:[%s472 + $0x30] sm:$0xf]
        %v486 = vld [vmem:[%s472 + $0x34] sm:$0xf]
        %v487 = vld [vmem:[%s472 + $0x38] sm:$0xf]
        %v488 = vld [vmem:[%s472 + $0x3c] sm:$0xf]
        %v489 = vld [vmem:[%s472 + $0x40] sm:$0xf]
        %v490 = vld [vmem:[%s472 + $0x44] sm:$0xf]
        %v491 = vld [vmem:[%s472 + $0x48] sm:$0xf]
        %v492 = vld [vmem:[%s472 + $0x4c] sm:$0xf]
        %v493 = vld [vmem:[%s472 + $0x50] sm:$0xf]
        %v494 = vld [vmem:[%s472 + $0x54] sm:$0xf]
        %v495 = vld [vmem:[%s472 + $0x58] sm:$0xf]
        %v496 = vld [vmem:[%s472 + $0x5c] sm:$0xf]
        %v497 = vld [vmem:[%s472 + $0x60] sm:$0xf]
        %v498 = vld [vmem:[%s472 + $0x64] sm:$0xf]
        %v499 = vld [vmem:[%s472 + $0x68] sm:$0xf]
        %v500 = vld [vmem:[%s472 + $0x6c] sm:$0xf]
        %v501 = vld [vmem:[%s472 + $0x70] sm:$0xf]
        %v502 = vld [vmem:[%s472 + $0x74] sm:$0xf]
        %v503 = vld [vmem:[%s472 + $0x78] sm:$0xf]
        %v504 = vld [vmem:[%s472 + $0x7c] sm:$0xf]
        %v505 = vld [vmem:[%s472 + $0x80] sm:$0xf]
        %v506 = vld [vmem:[%s472 + $0x84] sm:$0xf]
        %v507 = vld [vmem:[%s472 + $0x88] sm:$0xf]
        %v508 = vld [vmem:[%s472 + $0x8c] sm:$0xf]
        %v509 = vld [vmem:[%s472 + $0x90] sm:$0xf]
        %v510 = vld [vmem:[%s472 + $0x94] sm:$0xf]
        %v511 = vld [vmem:[%s472 + $0x98] sm:$0xf]
        %v512 = vld [vmem:[%s472 + $0x9c] sm:$0xf]
        %v513 = vld [vmem:[%s472 + $0xa0] sm:$0xf]
        %v514 = vld [vmem:[%s472 + $0xa4] sm:$0xf]
        %v515 = vld [vmem:[%s472 + $0xa8] sm:$0xf]
        %v516 = vld [vmem:[%s472 + $0xac] sm:$0xf]
        %v517 = vld [vmem:[%s472 + $0xb0] sm:$0xf]
        %v518 = vld [vmem:[%s472 + $0xb4] sm:$0xf]
        %v519 = vld [vmem:[%s472 + $0xb8] sm:$0xf]
        %v520 = vld [vmem:[%s472 + $0xbc] sm:$0xf]
        %v521 = vld [vmem:[%s472 + $0xc0] sm:$0xf]
        %v522 = vld [vmem:[%s472 + $0xc4] sm:$0xf]
        %v523 = vld [vmem:[%s472 + $0xc8] sm:$0xf]
        %v524 = vld [vmem:[%s472 + $0xcc] sm:$0xf]
        %v525 = vld [vmem:[%s472 + $0xd0] sm:$0xf]
        %v526 = vld [vmem:[%s472 + $0xd4] sm:$0xf]
        %v527 = vld [vmem:[%s472 + $0xd8] sm:$0xf]
        %v528 = vld [vmem:[%s472 + $0xdc] sm:$0xf]
        %v529 = vld [vmem:[%s472 + $0xe0] sm:$0xf]
        %v530 = vld [vmem:[%s472 + $0xe4] sm:$0xf]
        %v531 = vld [vmem:[%s472 + $0xe8] sm:$0xf]
        %v532 = vld [vmem:[%s472 + $0xec] sm:$0xf]
        %v533 = vld [vmem:[%s472 + $0xf0] sm:$0xf]
        %v534 = vld [vmem:[%s472 + $0xf4] sm:$0xf]
        %v535 = vld [vmem:[%s472 + $0xf8] sm:$0xf]
        %v536 = vld [vmem:[%s472 + $0xfc] sm:$0xf]
        %v665 = vunpack.c.l.b16 %v341
        %v666 = vunpack.c.h.b16 %v341
        %v667 = vunpack.c.l.b16 %v342
        %v668 = vunpack.c.h.b16 %v342
        %v669 = vunpack.c.l.b16 %v343
        %v670 = vunpack.c.h.b16 %v343
        %v671 = vunpack.c.l.b16 %v344
        %v672 = vunpack.c.h.b16 %v344
        %v673 = vunpack.c.l.b16 %v345
        %v674 = vunpack.c.h.b16 %v345
        %v675 = vunpack.c.l.b16 %v346
        %v676 = vunpack.c.h.b16 %v346
        %v677 = vunpack.c.l.b16 %v347
        %v678 = vunpack.c.h.b16 %v347
        %v679 = vunpack.c.l.b16 %v348
        %v680 = vunpack.c.h.b16 %v348
        %v681 = vunpack.c.l.b16 %v349
        %v682 = vunpack.c.h.b16 %v349
        %v683 = vunpack.c.l.b16 %v350
        %v684 = vunpack.c.h.b16 %v350
        %v685 = vunpack.c.l.b16 %v351
        %v686 = vunpack.c.h.b16 %v351
        %v687 = vunpack.c.l.b16 %v352
        %v688 = vunpack.c.h.b16 %v352
        %v689 = vunpack.c.l.b16 %v353
        %v690 = vunpack.c.h.b16 %v353
        %v691 = vunpack.c.l.b16 %v354
        %v692 = vunpack.c.h.b16 %v354
        %v693 = vunpack.c.l.b16 %v355
        %v694 = vunpack.c.h.b16 %v355
        %v695 = vunpack.c.l.b16 %v356
        %v696 = vunpack.c.h.b16 %v356
        %v697 = vunpack.c.l.b16 %v357
        %v698 = vunpack.c.h.b16 %v357
        %v699 = vunpack.c.l.b16 %v358
        %v700 = vunpack.c.h.b16 %v358
        %v701 = vunpack.c.l.b16 %v359
        %v702 = vunpack.c.h.b16 %v359
        %v703 = vunpack.c.l.b16 %v360
        %v704 = vunpack.c.h.b16 %v360
        %v705 = vunpack.c.l.b16 %v361
        %v706 = vunpack.c.h.b16 %v361
        %v707 = vunpack.c.l.b16 %v362
        %v708 = vunpack.c.h.b16 %v362
        %v709 = vunpack.c.l.b16 %v363
        %v710 = vunpack.c.h.b16 %v363
        %v711 = vunpack.c.l.b16 %v364
        %v712 = vunpack.c.h.b16 %v364
        %v713 = vunpack.c.l.b16 %v365
        %v714 = vunpack.c.h.b16 %v365
        %v715 = vunpack.c.l.b16 %v366
        %v716 = vunpack.c.h.b16 %v366
        %v717 = vunpack.c.l.b16 %v367
        %v718 = vunpack.c.h.b16 %v367
        %v719 = vunpack.c.l.b16 %v368
        %v720 = vunpack.c.h.b16 %v368
        %v721 = vunpack.c.l.b16 %v369
        %v722 = vunpack.c.h.b16 %v369
        %v723 = vunpack.c.l.b16 %v370
        %v724 = vunpack.c.h.b16 %v370
        %v725 = vunpack.c.l.b16 %v371
        %v726 = vunpack.c.h.b16 %v371
        %v727 = vunpack.c.l.b16 %v372
        %v728 = vunpack.c.h.b16 %v372
        %v729 = vunpack.c.l.b16 %v373
        %v730 = vunpack.c.h.b16 %v373
        %v731 = vunpack.c.l.b16 %v374
        %v732 = vunpack.c.h.b16 %v374
        %v733 = vunpack.c.l.b16 %v375
        %v734 = vunpack.c.h.b16 %v375
        %v735 = vunpack.c.l.b16 %v376
        %v736 = vunpack.c.h.b16 %v376
        %v737 = vunpack.c.l.b16 %v377
        %v738 = vunpack.c.h.b16 %v377
        %v739 = vunpack.c.l.b16 %v378
        %v740 = vunpack.c.h.b16 %v378
        %v741 = vunpack.c.l.b16 %v379
        %v742 = vunpack.c.h.b16 %v379
        %v743 = vunpack.c.l.b16 %v380
        %v744 = vunpack.c.h.b16 %v380
        %v745 = vunpack.c.l.b16 %v381
        %v746 = vunpack.c.h.b16 %v381
        %v747 = vunpack.c.l.b16 %v382
        %v748 = vunpack.c.h.b16 %v382
        %v749 = vunpack.c.l.b16 %v383
        %v750 = vunpack.c.h.b16 %v383
        %v751 = vunpack.c.l.b16 %v384
        %v752 = vunpack.c.h.b16 %v384
        %v753 = vunpack.c.l.b16 %v385
        %v754 = vunpack.c.h.b16 %v385
        %v755 = vunpack.c.l.b16 %v386
        %v756 = vunpack.c.h.b16 %v386
        %v757 = vunpack.c.l.b16 %v387
        %v758 = vunpack.c.h.b16 %v387
        %v759 = vunpack.c.l.b16 %v388
        %v760 = vunpack.c.h.b16 %v388
        %v761 = vunpack.c.l.b16 %v389
        %v762 = vunpack.c.h.b16 %v389
        %v763 = vunpack.c.l.b16 %v390
        %v764 = vunpack.c.h.b16 %v390
        %v765 = vunpack.c.l.b16 %v391
        %v766 = vunpack.c.h.b16 %v391
        %v767 = vunpack.c.l.b16 %v392
        %v768 = vunpack.c.h.b16 %v392
        %v769 = vunpack.c.l.b16 %v393
        %v770 = vunpack.c.h.b16 %v393
        %v771 = vunpack.c.l.b16 %v394
        %v772 = vunpack.c.h.b16 %v394
        %v773 = vunpack.c.l.b16 %v395
        %v774 = vunpack.c.h.b16 %v395
        %v775 = vunpack.c.l.b16 %v396
        %v776 = vunpack.c.h.b16 %v396
        %v777 = vunpack.c.l.b16 %v397
        %v778 = vunpack.c.h.b16 %v397
        %v779 = vunpack.c.l.b16 %v398
        %v780 = vunpack.c.h.b16 %v398
        %v781 = vunpack.c.l.b16 %v399
        %v782 = vunpack.c.h.b16 %v399
        %v783 = vunpack.c.l.b16 %v400
        %v784 = vunpack.c.h.b16 %v400
        %v785 = vunpack.c.l.b16 %v401
        %v786 = vunpack.c.h.b16 %v401
        %v787 = vunpack.c.l.b16 %v402
        %v788 = vunpack.c.h.b16 %v402
        %v789 = vunpack.c.l.b16 %v403
        %v790 = vunpack.c.h.b16 %v403
        %v791 = vunpack.c.l.b16 %v404
        %v792 = vunpack.c.h.b16 %v404
        %v793 = vunpack.c.l.b16 %v405
        %v794 = vunpack.c.h.b16 %v405
        %v795 = vunpack.c.l.b16 %v406
        %v796 = vunpack.c.h.b16 %v406
        %v797 = vunpack.c.l.b16 %v407
        %v798 = vunpack.c.h.b16 %v407
        %v799 = vunpack.c.l.b16 %v408
        %v800 = vunpack.c.h.b16 %v408
        %v801 = vunpack.c.l.b16 %v409
        %v802 = vunpack.c.h.b16 %v409
        %v803 = vunpack.c.l.b16 %v410
        %v804 = vunpack.c.h.b16 %v410
        %v805 = vunpack.c.l.b16 %v411
        %v806 = vunpack.c.h.b16 %v411
        %v807 = vunpack.c.l.b16 %v412
        %v808 = vunpack.c.h.b16 %v412
        %v809 = vunpack.c.l.b16 %v413
        %v810 = vunpack.c.h.b16 %v413
        %v811 = vunpack.c.l.b16 %v414
        %v812 = vunpack.c.h.b16 %v414
        %v813 = vunpack.c.l.b16 %v415
        %v814 = vunpack.c.h.b16 %v415
        %v815 = vunpack.c.l.b16 %v416
        %v816 = vunpack.c.h.b16 %v416
        %v817 = vunpack.c.l.b16 %v417
        %v818 = vunpack.c.h.b16 %v417
        %v819 = vunpack.c.l.b16 %v418
        %v820 = vunpack.c.h.b16 %v418
        %v821 = vunpack.c.l.b16 %v419
        %v822 = vunpack.c.h.b16 %v419
        %v823 = vunpack.c.l.b16 %v420
        %v824 = vunpack.c.h.b16 %v420
        %v825 = vunpack.c.l.b16 %v421
        %v826 = vunpack.c.h.b16 %v421
        %v827 = vunpack.c.l.b16 %v422
        %v828 = vunpack.c.h.b16 %v422
        %v829 = vunpack.c.l.b16 %v423
        %v830 = vunpack.c.h.b16 %v423
        %v831 = vunpack.c.l.b16 %v424
        %v832 = vunpack.c.h.b16 %v424
        %v833 = vunpack.c.l.b16 %v425
        %v834 = vunpack.c.h.b16 %v425
        %v835 = vunpack.c.l.b16 %v426
        %v836 = vunpack.c.h.b16 %v426
        %v837 = vunpack.c.l.b16 %v427
        %v838 = vunpack.c.h.b16 %v427
        %v839 = vunpack.c.l.b16 %v428
        %v840 = vunpack.c.h.b16 %v428
        %v841 = vunpack.c.l.b16 %v429
        %v842 = vunpack.c.h.b16 %v429
        %v843 = vunpack.c.l.b16 %v430
        %v844 = vunpack.c.h.b16 %v430
        %v845 = vunpack.c.l.b16 %v431
        %v846 = vunpack.c.h.b16 %v431
        %v847 = vunpack.c.l.b16 %v432
        %v848 = vunpack.c.h.b16 %v432
        %v849 = vunpack.c.l.b16 %v433
        %v850 = vunpack.c.h.b16 %v433
        %v851 = vunpack.c.l.b16 %v434
        %v852 = vunpack.c.h.b16 %v434
        %v853 = vunpack.c.l.b16 %v435
        %v854 = vunpack.c.h.b16 %v435
        %v855 = vunpack.c.l.b16 %v436
        %v856 = vunpack.c.h.b16 %v436
        %v857 = vunpack.c.l.b16 %v437
        %v858 = vunpack.c.h.b16 %v437
        %v859 = vunpack.c.l.b16 %v438
        %v860 = vunpack.c.h.b16 %v438
        %v861 = vunpack.c.l.b16 %v439
        %v862 = vunpack.c.h.b16 %v439
        %v863 = vunpack.c.l.b16 %v440
        %v864 = vunpack.c.h.b16 %v440
        %v865 = vunpack.c.l.b16 %v441
        %v866 = vunpack.c.h.b16 %v441
        %v867 = vunpack.c.l.b16 %v442
        %v868 = vunpack.c.h.b16 %v442
        %v869 = vunpack.c.l.b16 %v443
        %v870 = vunpack.c.h.b16 %v443
        %v871 = vunpack.c.l.b16 %v444
        %v872 = vunpack.c.h.b16 %v444
        %v873 = vunpack.c.l.b16 %v445
        %v874 = vunpack.c.h.b16 %v445
        %v875 = vunpack.c.l.b16 %v446
        %v876 = vunpack.c.h.b16 %v446
        %v877 = vunpack.c.l.b16 %v447
        %v878 = vunpack.c.h.b16 %v447
        %v879 = vunpack.c.l.b16 %v448
        %v880 = vunpack.c.h.b16 %v448
        %v881 = vunpack.c.l.b16 %v449
        %v882 = vunpack.c.h.b16 %v449
        %v883 = vunpack.c.l.b16 %v450
        %v884 = vunpack.c.h.b16 %v450
        %v885 = vunpack.c.l.b16 %v451
        %v886 = vunpack.c.h.b16 %v451
        %v887 = vunpack.c.l.b16 %v452
        %v888 = vunpack.c.h.b16 %v452
        %v889 = vunpack.c.l.b16 %v453
        %v890 = vunpack.c.h.b16 %v453
        %v891 = vunpack.c.l.b16 %v454
        %v892 = vunpack.c.h.b16 %v454
        %v893 = vunpack.c.l.b16 %v455
        %v894 = vunpack.c.h.b16 %v455
        %v895 = vunpack.c.l.b16 %v456
        %v896 = vunpack.c.h.b16 %v456
        %v897 = vunpack.c.l.b16 %v457
        %v898 = vunpack.c.h.b16 %v457
        %v899 = vunpack.c.l.b16 %v458
        %v900 = vunpack.c.h.b16 %v458
        %v901 = vunpack.c.l.b16 %v459
        %v902 = vunpack.c.h.b16 %v459
        %v903 = vunpack.c.l.b16 %v460
        %v904 = vunpack.c.h.b16 %v460
        %v905 = vunpack.c.l.b16 %v461
        %v906 = vunpack.c.h.b16 %v461
        %v907 = vunpack.c.l.b16 %v462
        %v908 = vunpack.c.h.b16 %v462
        %v909 = vunpack.c.l.b16 %v463
        %v910 = vunpack.c.h.b16 %v463
        %v911 = vunpack.c.l.b16 %v464
        %v912 = vunpack.c.h.b16 %v464
        %v913 = vunpack.c.l.b16 %v465
        %v914 = vunpack.c.h.b16 %v465
        %v915 = vunpack.c.l.b16 %v466
        %v916 = vunpack.c.h.b16 %v466
        %v917 = vunpack.c.l.b16 %v467
        %v918 = vunpack.c.h.b16 %v467
        %v919 = vunpack.c.l.b16 %v468
        %v920 = vunpack.c.h.b16 %v468
        %v921 = vpack.c.b16 %v669, %v665
        %v922 = vpack.c.b16 %v670, %v666
        %v923 = vpack.c.b16 %v671, %v667
        %v924 = vpack.c.b16 %v672, %v668
        %v925 = vpack.c.b16 %v677, %v673
        %v926 = vpack.c.b16 %v678, %v674
        %v927 = vpack.c.b16 %v679, %v675
        %v928 = vpack.c.b16 %v680, %v676
        %v929 = vpack.c.b16 %v685, %v681
        %v930 = vpack.c.b16 %v686, %v682
        %v931 = vpack.c.b16 %v687, %v683
        %v932 = vpack.c.b16 %v688, %v684
        %v933 = vpack.c.b16 %v693, %v689
        %v934 = vpack.c.b16 %v694, %v690
        %v935 = vpack.c.b16 %v695, %v691
        %v936 = vpack.c.b16 %v696, %v692
        %v937 = vpack.c.b16 %v701, %v697
        %v938 = vpack.c.b16 %v702, %v698
        %v939 = vpack.c.b16 %v703, %v699
        %v940 = vpack.c.b16 %v704, %v700
        %v941 = vpack.c.b16 %v709, %v705
        %v942 = vpack.c.b16 %v710, %v706
        %v943 = vpack.c.b16 %v711, %v707
        %v944 = vpack.c.b16 %v712, %v708
        %v945 = vpack.c.b16 %v717, %v713
        %v946 = vpack.c.b16 %v718, %v714
        %v947 = vpack.c.b16 %v719, %v715
        %v948 = vpack.c.b16 %v720, %v716
        %v949 = vpack.c.b16 %v725, %v721
        %v950 = vpack.c.b16 %v726, %v722
        %v951 = vpack.c.b16 %v727, %v723
        %v952 = vpack.c.b16 %v728, %v724
        %v953 = vpack.c.b16 %v733, %v729
        %v954 = vpack.c.b16 %v734, %v730
        %v955 = vpack.c.b16 %v735, %v731
        %v956 = vpack.c.b16 %v736, %v732
        %v957 = vpack.c.b16 %v741, %v737
        %v958 = vpack.c.b16 %v742, %v738
        %v959 = vpack.c.b16 %v743, %v739
        %v960 = vpack.c.b16 %v744, %v740
        %v961 = vpack.c.b16 %v749, %v745
        %v962 = vpack.c.b16 %v750, %v746
        %v963 = vpack.c.b16 %v751, %v747
        %v964 = vpack.c.b16 %v752, %v748
        %v965 = vpack.c.b16 %v757, %v753
        %v966 = vpack.c.b16 %v758, %v754
        %v967 = vpack.c.b16 %v759, %v755
        %v968 = vpack.c.b16 %v760, %v756
        %v969 = vpack.c.b16 %v765, %v761
        %v970 = vpack.c.b16 %v766, %v762
        %v971 = vpack.c.b16 %v767, %v763
        %v972 = vpack.c.b16 %v768, %v764
        %v973 = vpack.c.b16 %v773, %v769
        %v974 = vpack.c.b16 %v774, %v770
        %v975 = vpack.c.b16 %v775, %v771
        %v976 = vpack.c.b16 %v776, %v772
        %v977 = vpack.c.b16 %v781, %v777
        %v978 = vpack.c.b16 %v782, %v778
        %v979 = vpack.c.b16 %v783, %v779
        %v980 = vpack.c.b16 %v784, %v780
        %v981 = vpack.c.b16 %v789, %v785
        %v982 = vpack.c.b16 %v790, %v786
        %v983 = vpack.c.b16 %v791, %v787
        %v984 = vpack.c.b16 %v792, %v788
        %v985 = vpack.c.b16 %v797, %v793
        %v986 = vpack.c.b16 %v798, %v794
        %v987 = vpack.c.b16 %v799, %v795
        %v988 = vpack.c.b16 %v800, %v796
        %v989 = vpack.c.b16 %v805, %v801
        %v990 = vpack.c.b16 %v806, %v802
        %v991 = vpack.c.b16 %v807, %v803
        %v992 = vpack.c.b16 %v808, %v804
        %v993 = vpack.c.b16 %v813, %v809
        %v994 = vpack.c.b16 %v814, %v810
        %v995 = vpack.c.b16 %v815, %v811
        %v996 = vpack.c.b16 %v816, %v812
        %v997 = vpack.c.b16 %v821, %v817
        %v998 = vpack.c.b16 %v822, %v818
        %v999 = vpack.c.b16 %v823, %v819
        %v1000 = vpack.c.b16 %v824, %v820
        %v1001 = vpack.c.b16 %v829, %v825
        %v1002 = vpack.c.b16 %v830, %v826
        %v1003 = vpack.c.b16 %v831, %v827
        %v1004 = vpack.c.b16 %v832, %v828
        %v1005 = vpack.c.b16 %v837, %v833
        %v1006 = vpack.c.b16 %v838, %v834
        %v1007 = vpack.c.b16 %v839, %v835
        %v1008 = vpack.c.b16 %v840, %v836
        %v1009 = vpack.c.b16 %v845, %v841
        %v1010 = vpack.c.b16 %v846, %v842
        %v1011 = vpack.c.b16 %v847, %v843
        %v1012 = vpack.c.b16 %v848, %v844
        %v1013 = vpack.c.b16 %v853, %v849
        %v1014 = vpack.c.b16 %v854, %v850
        %v1015 = vpack.c.b16 %v855, %v851
        %v1016 = vpack.c.b16 %v856, %v852
        %v1017 = vpack.c.b16 %v861, %v857
        %v1018 = vpack.c.b16 %v862, %v858
        %v1019 = vpack.c.b16 %v863, %v859
        %v1020 = vpack.c.b16 %v864, %v860
        %v1021 = vpack.c.b16 %v869, %v865
        %v1022 = vpack.c.b16 %v870, %v866
        %v1023 = vpack.c.b16 %v871, %v867
        %v1024 = vpack.c.b16 %v872, %v868
        %v1025 = vpack.c.b16 %v877, %v873
        %v1026 = vpack.c.b16 %v878, %v874
        %v1027 = vpack.c.b16 %v879, %v875
        %v1028 = vpack.c.b16 %v880, %v876
        %v1029 = vpack.c.b16 %v885, %v881
        %v1030 = vpack.c.b16 %v886, %v882
        %v1031 = vpack.c.b16 %v887, %v883
        %v1032 = vpack.c.b16 %v888, %v884
        %v1033 = vpack.c.b16 %v893, %v889
        %v1034 = vpack.c.b16 %v894, %v890
        %v1035 = vpack.c.b16 %v895, %v891
        %v1036 = vpack.c.b16 %v896, %v892
        %v1037 = vpack.c.b16 %v901, %v897
        %v1038 = vpack.c.b16 %v902, %v898
        %v1039 = vpack.c.b16 %v903, %v899
        %v1040 = vpack.c.b16 %v904, %v900
        %v1041 = vpack.c.b16 %v909, %v905
        %v1042 = vpack.c.b16 %v910, %v906
        %v1043 = vpack.c.b16 %v911, %v907
        %v1044 = vpack.c.b16 %v912, %v908
        %v1045 = vpack.c.b16 %v917, %v913
        %v1046 = vpack.c.b16 %v918, %v914
        %v1047 = vpack.c.b16 %v919, %v915
        %v1048 = vpack.c.b16 %v920, %v916
        %v1241 = vunpack.c.l.b16 %v473
        %v1242 = vunpack.c.l.b16 %v474
        %v1243 = vunpack.c.l.b16 %v475
        %v1244 = vunpack.c.l.b16 %v476
        %v1245 = vunpack.c.l.b16 %v477
        %v1246 = vunpack.c.l.b16 %v478
        %v1247 = vunpack.c.l.b16 %v479
        %v1248 = vunpack.c.l.b16 %v480
        %v1249 = vunpack.c.l.b16 %v481
        %v1250 = vunpack.c.l.b16 %v482
        %v1251 = vunpack.c.l.b16 %v483
        %v1252 = vunpack.c.l.b16 %v484
        %v1253 = vunpack.c.l.b16 %v485
        %v1254 = vunpack.c.l.b16 %v486
        %v1255 = vunpack.c.l.b16 %v487
        %v1256 = vunpack.c.l.b16 %v488
        %v1257 = vunpack.c.l.b16 %v489
        %v1258 = vunpack.c.l.b16 %v490
        %v1259 = vunpack.c.l.b16 %v491
        %v1260 = vunpack.c.l.b16 %v492
        %v1261 = vunpack.c.l.b16 %v493
        %v1262 = vunpack.c.l.b16 %v494
        %v1263 = vunpack.c.l.b16 %v495
        %v1264 = vunpack.c.l.b16 %v496
        %v1265 = vunpack.c.l.b16 %v497
        %v1266 = vunpack.c.l.b16 %v498
        %v1267 = vunpack.c.l.b16 %v499
        %v1268 = vunpack.c.l.b16 %v500
        %v1269 = vunpack.c.l.b16 %v501
        %v1270 = vunpack.c.l.b16 %v502
        %v1271 = vunpack.c.l.b16 %v503
        %v1272 = vunpack.c.l.b16 %v504
        %v1273 = vunpack.c.l.b16 %v505
        %v1274 = vunpack.c.l.b16 %v506
        %v1275 = vunpack.c.l.b16 %v507
        %v1276 = vunpack.c.l.b16 %v508
        %v1277 = vunpack.c.l.b16 %v509
        %v1278 = vunpack.c.l.b16 %v510
        %v1279 = vunpack.c.l.b16 %v511
        %v1280 = vunpack.c.l.b16 %v512
        %v1281 = vunpack.c.l.b16 %v513
        %v1282 = vunpack.c.l.b16 %v514
        %v1283 = vunpack.c.l.b16 %v515
        %v1284 = vunpack.c.l.b16 %v516
        %v1285 = vunpack.c.l.b16 %v517
        %v1286 = vunpack.c.l.b16 %v518
        %v1287 = vunpack.c.l.b16 %v519
        %v1288 = vunpack.c.l.b16 %v520
        %v1289 = vunpack.c.l.b16 %v521
        %v1290 = vunpack.c.l.b16 %v522
        %v1291 = vunpack.c.l.b16 %v523
        %v1292 = vunpack.c.l.b16 %v524
        %v1293 = vunpack.c.l.b16 %v525
        %v1294 = vunpack.c.l.b16 %v526
        %v1295 = vunpack.c.l.b16 %v527
        %v1296 = vunpack.c.l.b16 %v528
        %v1297 = vunpack.c.l.b16 %v529
        %v1298 = vunpack.c.l.b16 %v530
        %v1299 = vunpack.c.l.b16 %v531
        %v1300 = vunpack.c.l.b16 %v532
        %v1301 = vunpack.c.l.b16 %v533
        %v1302 = vunpack.c.l.b16 %v534
        %v1303 = vunpack.c.l.b16 %v535
        %v1304 = vunpack.c.l.b16 %v536
        %v1305 = vpack.c.b16 %v1242, %v1241
        %v1306 = vpack.c.b16 %v1244, %v1243
        %v1307 = vpack.c.b16 %v1246, %v1245
        %v1308 = vpack.c.b16 %v1248, %v1247
        %v1309 = vpack.c.b16 %v1250, %v1249
        %v1310 = vpack.c.b16 %v1252, %v1251
        %v1311 = vpack.c.b16 %v1254, %v1253
        %v1312 = vpack.c.b16 %v1256, %v1255
        %v1313 = vpack.c.b16 %v1258, %v1257
        %v1314 = vpack.c.b16 %v1260, %v1259
        %v1315 = vpack.c.b16 %v1262, %v1261
        %v1316 = vpack.c.b16 %v1264, %v1263
        %v1317 = vpack.c.b16 %v1266, %v1265
        %v1318 = vpack.c.b16 %v1268, %v1267
        %v1319 = vpack.c.b16 %v1270, %v1269
        %v1320 = vpack.c.b16 %v1272, %v1271
        %v1321 = vpack.c.b16 %v1274, %v1273
        %v1322 = vpack.c.b16 %v1276, %v1275
        %v1323 = vpack.c.b16 %v1278, %v1277
        %v1324 = vpack.c.b16 %v1280, %v1279
        %v1325 = vpack.c.b16 %v1282, %v1281
        %v1326 = vpack.c.b16 %v1284, %v1283
        %v1327 = vpack.c.b16 %v1286, %v1285
        %v1328 = vpack.c.b16 %v1288, %v1287
        %v1329 = vpack.c.b16 %v1290, %v1289
        %v1330 = vpack.c.b16 %v1292, %v1291
        %v1331 = vpack.c.b16 %v1294, %v1293
        %v1332 = vpack.c.b16 %v1296, %v1295
        %v1333 = vpack.c.b16 %v1298, %v1297
        %v1334 = vpack.c.b16 %v1300, %v1299
        %v1335 = vpack.c.b16 %v1302, %v1301
        %v1336 = vpack.c.b16 %v1304, %v1303
        %1369 = vmatpush.bf16.msra.mxu0 %v1312
        %1370 = vmatpush.bf16.msra.mxu0 %v1311
        %1371 = vmatpush.bf16.msra.mxu0 %v1310
        %1372 = vmatpush.bf16.msra.mxu0 %v1309
        %1373 = vmatpush.bf16.msra.mxu0 %v1308
        %1374 = vmatpush.bf16.msra.mxu0 %v1307
        %1375 = vmatpush.bf16.msra.mxu0 %v1306
        %1376 = vmatpush.bf16.msra.mxu0 %v1305
        %1377 = vmatmul.bf16.gmra.mxu0 %v921
        %v1378 = vpop.f32.mrf.mxu0
        %v1379 = vadd.f32 0.0, %v1378
        %v1380 = vpop.f32.mrf.mxu0
        %v1381 = vadd.f32 0.0, %v1380
        %1382 = vmatmul.bf16.gmra.mxu0 %v925
        %v1383 = vpop.f32.mrf.mxu0
        %v1384 = vadd.f32 0.0, %v1383
        %v1385 = vpop.f32.mrf.mxu0
        %v1386 = vadd.f32 0.0, %v1385
        %1387 = vmatmul.bf16.gmra.mxu0 %v929
        %v1388 = vpop.f32.mrf.mxu0
        %v1389 = vadd.f32 0.0, %v1388
        %v1390 = vpop.f32.mrf.mxu0
        %v1391 = vadd.f32 0.0, %v1390
        %1392 = vmatmul.bf16.gmra.mxu0 %v933
        %v1393 = vpop.f32.mrf.mxu0
        %v1394 = vadd.f32 0.0, %v1393
        %v1395 = vpop.f32.mrf.mxu0
        %v1396 = vadd.f32 0.0, %v1395
        %1397 = vmatmul.bf16.gmra.mxu0 %v937
        %v1398 = vpop.f32.mrf.mxu0
        %v1399 = vadd.f32 0.0, %v1398
        %v1400 = vpop.f32.mrf.mxu0
        %v1401 = vadd.f32 0.0, %v1400
        %1402 = vmatmul.bf16.gmra.mxu0 %v941
        %v1403 = vpop.f32.mrf.mxu0
        %v1404 = vadd.f32 0.0, %v1403
        %v1405 = vpop.f32.mrf.mxu0
        %v1406 = vadd.f32 0.0, %v1405
        %1407 = vmatmul.bf16.gmra.mxu0 %v945
        %v1408 = vpop.f32.mrf.mxu0
        %v1409 = vadd.f32 0.0, %v1408
        %v1410 = vpop.f32.mrf.mxu0
        %v1411 = vadd.f32 0.0, %v1410
        %1412 = vmatmul.bf16.gmra.mxu0 %v949
        %v1413 = vpop.f32.mrf.mxu0
        %v1414 = vadd.f32 0.0, %v1413
        %v1415 = vpop.f32.mrf.mxu0
        %v1416 = vadd.f32 0.0, %v1415
        %1417 = vmatmul.bf16.gmra.mxu0 %v953
        %v1418 = vpop.f32.mrf.mxu0
        %v1419 = vadd.f32 0.0, %v1418
        %v1420 = vpop.f32.mrf.mxu0
        %v1421 = vadd.f32 0.0, %v1420
        %1422 = vmatmul.bf16.gmra.mxu0 %v957
        %v1423 = vpop.f32.mrf.mxu0
        %v1424 = vadd.f32 0.0, %v1423
        %v1425 = vpop.f32.mrf.mxu0
        %v1426 = vadd.f32 0.0, %v1425
        %1427 = vmatmul.bf16.gmra.mxu0 %v961
        %v1428 = vpop.f32.mrf.mxu0
        %v1429 = vadd.f32 0.0, %v1428
        %v1430 = vpop.f32.mrf.mxu0
        %v1431 = vadd.f32 0.0, %v1430
        %1432 = vmatmul.bf16.gmra.mxu0 %v965
        %v1433 = vpop.f32.mrf.mxu0
        %v1434 = vadd.f32 0.0, %v1433
        %v1435 = vpop.f32.mrf.mxu0
        %v1436 = vadd.f32 0.0, %v1435
        %1437 = vmatmul.bf16.gmra.mxu0 %v969
        %v1438 = vpop.f32.mrf.mxu0
        %v1439 = vadd.f32 0.0, %v1438
        %v1440 = vpop.f32.mrf.mxu0
        %v1441 = vadd.f32 0.0, %v1440
        %1442 = vmatmul.bf16.gmra.mxu0 %v973
        %v1443 = vpop.f32.mrf.mxu0
        %v1444 = vadd.f32 0.0, %v1443
        %v1445 = vpop.f32.mrf.mxu0
        %v1446 = vadd.f32 0.0, %v1445
        %1447 = vmatmul.bf16.gmra.mxu0 %v977
        %v1448 = vpop.f32.mrf.mxu0
        %v1449 = vadd.f32 0.0, %v1448
        %v1450 = vpop.f32.mrf.mxu0
        %v1451 = vadd.f32 0.0, %v1450
        %1452 = vmatmul.bf16.gmra.mxu0 %v981
        %v1453 = vpop.f32.mrf.mxu0
        %v1454 = vadd.f32 0.0, %v1453
        %v1455 = vpop.f32.mrf.mxu0
        %v1456 = vadd.f32 0.0, %v1455
        %1457 = vmatmul.bf16.gmra.mxu0 %v985
        %v1458 = vpop.f32.mrf.mxu0
        %v1459 = vadd.f32 0.0, %v1458
        %v1460 = vpop.f32.mrf.mxu0
        %v1461 = vadd.f32 0.0, %v1460
        %1462 = vmatmul.bf16.gmra.mxu0 %v989
        %v1463 = vpop.f32.mrf.mxu0
        %v1464 = vadd.f32 0.0, %v1463
        %v1465 = vpop.f32.mrf.mxu0
        %v1466 = vadd.f32 0.0, %v1465
        %1467 = vmatmul.bf16.gmra.mxu0 %v993
        %v1468 = vpop.f32.mrf.mxu0
        %v1469 = vadd.f32 0.0, %v1468
        %v1470 = vpop.f32.mrf.mxu0
        %v1471 = vadd.f32 0.0, %v1470
        %1472 = vmatmul.bf16.gmra.mxu0 %v997
        %v1473 = vpop.f32.mrf.mxu0
        %v1474 = vadd.f32 0.0, %v1473
        %v1475 = vpop.f32.mrf.mxu0
        %v1476 = vadd.f32 0.0, %v1475
        %1477 = vmatmul.bf16.gmra.mxu0 %v1001
        %v1478 = vpop.f32.mrf.mxu0
        %v1479 = vadd.f32 0.0, %v1478
        %v1480 = vpop.f32.mrf.mxu0
        %v1481 = vadd.f32 0.0, %v1480
        %1482 = vmatmul.bf16.gmra.mxu0 %v1005
        %v1483 = vpop.f32.mrf.mxu0
        %v1484 = vadd.f32 0.0, %v1483
        %v1485 = vpop.f32.mrf.mxu0
        %v1486 = vadd.f32 0.0, %v1485
        %1487 = vmatmul.bf16.gmra.mxu0 %v1009
        %v1488 = vpop.f32.mrf.mxu0
        %v1489 = vadd.f32 0.0, %v1488
        %v1490 = vpop.f32.mrf.mxu0
        %v1491 = vadd.f32 0.0, %v1490
        %1492 = vmatmul.bf16.gmra.mxu0 %v1013
        %v1493 = vpop.f32.mrf.mxu0
        %v1494 = vadd.f32 0.0, %v1493
        %v1495 = vpop.f32.mrf.mxu0
        %v1496 = vadd.f32 0.0, %v1495
        %1497 = vmatmul.bf16.gmra.mxu0 %v1017
        %v1498 = vpop.f32.mrf.mxu0
        %v1499 = vadd.f32 0.0, %v1498
        %v1500 = vpop.f32.mrf.mxu0
        %v1501 = vadd.f32 0.0, %v1500
        %1502 = vmatmul.bf16.gmra.mxu0 %v1021
        %v1503 = vpop.f32.mrf.mxu0
        %v1504 = vadd.f32 0.0, %v1503
        %v1505 = vpop.f32.mrf.mxu0
        %v1506 = vadd.f32 0.0, %v1505
        %1507 = vmatmul.bf16.gmra.mxu0 %v1025
        %v1508 = vpop.f32.mrf.mxu0
        %v1509 = vadd.f32 0.0, %v1508
        %v1510 = vpop.f32.mrf.mxu0
        %v1511 = vadd.f32 0.0, %v1510
        %1512 = vmatmul.bf16.gmra.mxu0 %v1029
        %v1513 = vpop.f32.mrf.mxu0
        %v1514 = vadd.f32 0.0, %v1513
        %v1515 = vpop.f32.mrf.mxu0
        %v1516 = vadd.f32 0.0, %v1515
        %1517 = vmatmul.bf16.gmra.mxu0 %v1033
        %v1518 = vpop.f32.mrf.mxu0
        %v1519 = vadd.f32 0.0, %v1518
        %v1520 = vpop.f32.mrf.mxu0
        %v1521 = vadd.f32 0.0, %v1520
        %1522 = vmatmul.bf16.gmra.mxu0 %v1037
        %v1523 = vpop.f32.mrf.mxu0
        %v1524 = vadd.f32 0.0, %v1523
        %v1525 = vpop.f32.mrf.mxu0
        %v1526 = vadd.f32 0.0, %v1525
        %1527 = vmatmul.bf16.gmra.mxu0 %v1041
        %v1528 = vpop.f32.mrf.mxu0
        %v1529 = vadd.f32 0.0, %v1528
        %v1530 = vpop.f32.mrf.mxu0
        %v1531 = vadd.f32 0.0, %v1530
        %1532 = vmatmul.bf16.gmra.mxu0 %v1045
        %v1533 = vpop.f32.mrf.mxu0
        %v1534 = vadd.f32 0.0, %v1533
        %v1535 = vpop.f32.mrf.mxu0
        %v1536 = vadd.f32 0.0, %v1535
        %1537 = vdwg.mxu0
        %1538 = vmatpush.bf16.msra.mxu0 %v1320
        %1539 = vmatpush.bf16.msra.mxu0 %v1319
        %1540 = vmatpush.bf16.msra.mxu0 %v1318
        %1541 = vmatpush.bf16.msra.mxu0 %v1317
        %1542 = vmatpush.bf16.msra.mxu0 %v1316
        %1543 = vmatpush.bf16.msra.mxu0 %v1315
        %1544 = vmatpush.bf16.msra.mxu0 %v1314
        %1545 = vmatpush.bf16.msra.mxu0 %v1313
        %1546 = vmatmul.bf16.gmra.mxu0 %v922
        %v1547 = vpop.f32.mrf.mxu0
        %v1548 = vadd.f32 %v1379, %v1547
        %v1549 = vpop.f32.mrf.mxu0
        %v1550 = vadd.f32 %v1381, %v1549
        %1551 = vmatmul.bf16.gmra.mxu0 %v926
        %v1552 = vpop.f32.mrf.mxu0
        %v1553 = vadd.f32 %v1384, %v1552
        %v1554 = vpop.f32.mrf.mxu0
        %v1555 = vadd.f32 %v1386, %v1554
        %1556 = vmatmul.bf16.gmra.mxu0 %v930
        %v1557 = vpop.f32.mrf.mxu0
        %v1558 = vadd.f32 %v1389, %v1557
        %v1559 = vpop.f32.mrf.mxu0
        %v1560 = vadd.f32 %v1391, %v1559
        %1561 = vmatmul.bf16.gmra.mxu0 %v934
        %v1562 = vpop.f32.mrf.mxu0
        %v1563 = vadd.f32 %v1394, %v1562
        %v1564 = vpop.f32.mrf.mxu0
        %v1565 = vadd.f32 %v1396, %v1564
        %1566 = vmatmul.bf16.gmra.mxu0 %v938
        %v1567 = vpop.f32.mrf.mxu0
        %v1568 = vadd.f32 %v1399, %v1567
        %v1569 = vpop.f32.mrf.mxu0
        %v1570 = vadd.f32 %v1401, %v1569
        %1571 = vmatmul.bf16.gmra.mxu0 %v942
        %v1572 = vpop.f32.mrf.mxu0
        %v1573 = vadd.f32 %v1404, %v1572
        %v1574 = vpop.f32.mrf.mxu0
        %v1575 = vadd.f32 %v1406, %v1574
        %1576 = vmatmul.bf16.gmra.mxu0 %v946
        %v1577 = vpop.f32.mrf.mxu0
        %v1578 = vadd.f32 %v1409, %v1577
        %v1579 = vpop.f32.mrf.mxu0
        %v1580 = vadd.f32 %v1411, %v1579
        %1581 = vmatmul.bf16.gmra.mxu0 %v950
        %v1582 = vpop.f32.mrf.mxu0
        %v1583 = vadd.f32 %v1414, %v1582
        %v1584 = vpop.f32.mrf.mxu0
        %v1585 = vadd.f32 %v1416, %v1584
        %1586 = vmatmul.bf16.gmra.mxu0 %v954
        %v1587 = vpop.f32.mrf.mxu0
        %v1588 = vadd.f32 %v1419, %v1587
        %v1589 = vpop.f32.mrf.mxu0
        %v1590 = vadd.f32 %v1421, %v1589
        %1591 = vmatmul.bf16.gmra.mxu0 %v958
        %v1592 = vpop.f32.mrf.mxu0
        %v1593 = vadd.f32 %v1424, %v1592
        %v1594 = vpop.f32.mrf.mxu0
        %v1595 = vadd.f32 %v1426, %v1594
        %1596 = vmatmul.bf16.gmra.mxu0 %v962
        %v1597 = vpop.f32.mrf.mxu0
        %v1598 = vadd.f32 %v1429, %v1597
        %v1599 = vpop.f32.mrf.mxu0
        %v1600 = vadd.f32 %v1431, %v1599
        %1601 = vmatmul.bf16.gmra.mxu0 %v966
        %v1602 = vpop.f32.mrf.mxu0
        %v1603 = vadd.f32 %v1434, %v1602
        %v1604 = vpop.f32.mrf.mxu0
        %v1605 = vadd.f32 %v1436, %v1604
        %1606 = vmatmul.bf16.gmra.mxu0 %v970
        %v1607 = vpop.f32.mrf.mxu0
        %v1608 = vadd.f32 %v1439, %v1607
        %v1609 = vpop.f32.mrf.mxu0
        %v1610 = vadd.f32 %v1441, %v1609
        %1611 = vmatmul.bf16.gmra.mxu0 %v974
        %v1612 = vpop.f32.mrf.mxu0
        %v1613 = vadd.f32 %v1444, %v1612
        %v1614 = vpop.f32.mrf.mxu0
        %v1615 = vadd.f32 %v1446, %v1614
        %1616 = vmatmul.bf16.gmra.mxu0 %v978
        %v1617 = vpop.f32.mrf.mxu0
        %v1618 = vadd.f32 %v1449, %v1617
        %v1619 = vpop.f32.mrf.mxu0
        %v1620 = vadd.f32 %v1451, %v1619
        %1621 = vmatmul.bf16.gmra.mxu0 %v982
        %v1622 = vpop.f32.mrf.mxu0
        %v1623 = vadd.f32 %v1454, %v1622
        %v1624 = vpop.f32.mrf.mxu0
        %v1625 = vadd.f32 %v1456, %v1624
        %1626 = vmatmul.bf16.gmra.mxu0 %v986
        %v1627 = vpop.f32.mrf.mxu0
        %v1628 = vadd.f32 %v1459, %v1627
        %v1629 = vpop.f32.mrf.mxu0
        %v1630 = vadd.f32 %v1461, %v1629
        %1631 = vmatmul.bf16.gmra.mxu0 %v990
        %v1632 = vpop.f32.mrf.mxu0
        %v1633 = vadd.f32 %v1464, %v1632
        %v1634 = vpop.f32.mrf.mxu0
        %v1635 = vadd.f32 %v1466, %v1634
        %1636 = vmatmul.bf16.gmra.mxu0 %v994
        %v1637 = vpop.f32.mrf.mxu0
        %v1638 = vadd.f32 %v1469, %v1637
        %v1639 = vpop.f32.mrf.mxu0
        %v1640 = vadd.f32 %v1471, %v1639
        %1641 = vmatmul.bf16.gmra.mxu0 %v998
        %v1642 = vpop.f32.mrf.mxu0
        %v1643 = vadd.f32 %v1474, %v1642
        %v1644 = vpop.f32.mrf.mxu0
        %v1645 = vadd.f32 %v1476, %v1644
        %1646 = vmatmul.bf16.gmra.mxu0 %v1002
        %v1647 = vpop.f32.mrf.mxu0
        %v1648 = vadd.f32 %v1479, %v1647
        %v1649 = vpop.f32.mrf.mxu0
        %v1650 = vadd.f32 %v1481, %v1649
        %1651 = vmatmul.bf16.gmra.mxu0 %v1006
        %v1652 = vpop.f32.mrf.mxu0
        %v1653 = vadd.f32 %v1484, %v1652
        %v1654 = vpop.f32.mrf.mxu0
        %v1655 = vadd.f32 %v1486, %v1654
        %1656 = vmatmul.bf16.gmra.mxu0 %v1010
        %v1657 = vpop.f32.mrf.mxu0
        %v1658 = vadd.f32 %v1489, %v1657
        %v1659 = vpop.f32.mrf.mxu0
        %v1660 = vadd.f32 %v1491, %v1659
        %1661 = vmatmul.bf16.gmra.mxu0 %v1014
        %v1662 = vpop.f32.mrf.mxu0
        %v1663 = vadd.f32 %v1494, %v1662
        %v1664 = vpop.f32.mrf.mxu0
        %v1665 = vadd.f32 %v1496, %v1664
        %1666 = vmatmul.bf16.gmra.mxu0 %v1018
        %v1667 = vpop.f32.mrf.mxu0
        %v1668 = vadd.f32 %v1499, %v1667
        %v1669 = vpop.f32.mrf.mxu0
        %v1670 = vadd.f32 %v1501, %v1669
        %1671 = vmatmul.bf16.gmra.mxu0 %v1022
        %v1672 = vpop.f32.mrf.mxu0
        %v1673 = vadd.f32 %v1504, %v1672
        %v1674 = vpop.f32.mrf.mxu0
        %v1675 = vadd.f32 %v1506, %v1674
        %1676 = vmatmul.bf16.gmra.mxu0 %v1026
        %v1677 = vpop.f32.mrf.mxu0
        %v1678 = vadd.f32 %v1509, %v1677
        %v1679 = vpop.f32.mrf.mxu0
        %v1680 = vadd.f32 %v1511, %v1679
        %1681 = vmatmul.bf16.gmra.mxu0 %v1030
        %v1682 = vpop.f32.mrf.mxu0
        %v1683 = vadd.f32 %v1514, %v1682
        %v1684 = vpop.f32.mrf.mxu0
        %v1685 = vadd.f32 %v1516, %v1684
        %1686 = vmatmul.bf16.gmra.mxu0 %v1034
        %v1687 = vpop.f32.mrf.mxu0
        %v1688 = vadd.f32 %v1519, %v1687
        %v1689 = vpop.f32.mrf.mxu0
        %v1690 = vadd.f32 %v1521, %v1689
        %1691 = vmatmul.bf16.gmra.mxu0 %v1038
        %v1692 = vpop.f32.mrf.mxu0
        %v1693 = vadd.f32 %v1524, %v1692
        %v1694 = vpop.f32.mrf.mxu0
        %v1695 = vadd.f32 %v1526, %v1694
        %1696 = vmatmul.bf16.gmra.mxu0 %v1042
        %v1697 = vpop.f32.mrf.mxu0
        %v1698 = vadd.f32 %v1529, %v1697
        %v1699 = vpop.f32.mrf.mxu0
        %v1700 = vadd.f32 %v1531, %v1699
        %1701 = vmatmul.bf16.gmra.mxu0 %v1046
        %v1702 = vpop.f32.mrf.mxu0
        %v1703 = vadd.f32 %v1534, %v1702
        %v1704 = vpop.f32.mrf.mxu0
        %v1705 = vadd.f32 %v1536, %v1704
        %1706 = vdwg.mxu0
        %1707 = vmatpush.bf16.msra.mxu0 %v1328
        %1708 = vmatpush.bf16.msra.mxu0 %v1327
        %1709 = vmatpush.bf16.msra.mxu0 %v1326
        %1710 = vmatpush.bf16.msra.mxu0 %v1325
        %1711 = vmatpush.bf16.msra.mxu0 %v1324
        %1712 = vmatpush.bf16.msra.mxu0 %v1323
        %1713 = vmatpush.bf16.msra.mxu0 %v1322
        %1714 = vmatpush.bf16.msra.mxu0 %v1321
        %1715 = vmatmul.bf16.gmra.mxu0 %v923
        %v1716 = vpop.f32.mrf.mxu0
        %v1717 = vadd.f32 %v1548, %v1716
        %v1718 = vpop.f32.mrf.mxu0
        %v1719 = vadd.f32 %v1550, %v1718
        %1720 = vmatmul.bf16.gmra.mxu0 %v927
        %v1721 = vpop.f32.mrf.mxu0
        %v1722 = vadd.f32 %v1553, %v1721
        %v1723 = vpop.f32.mrf.mxu0
        %v1724 = vadd.f32 %v1555, %v1723
        %1725 = vmatmul.bf16.gmra.mxu0 %v931
        %v1726 = vpop.f32.mrf.mxu0
        %v1727 = vadd.f32 %v1558, %v1726
        %v1728 = vpop.f32.mrf.mxu0
        %v1729 = vadd.f32 %v1560, %v1728
        %1730 = vmatmul.bf16.gmra.mxu0 %v935
        %v1731 = vpop.f32.mrf.mxu0
        %v1732 = vadd.f32 %v1563, %v1731
        %v1733 = vpop.f32.mrf.mxu0
        %v1734 = vadd.f32 %v1565, %v1733
        %1735 = vmatmul.bf16.gmra.mxu0 %v939
        %v1736 = vpop.f32.mrf.mxu0
        %v1737 = vadd.f32 %v1568, %v1736
        %v1738 = vpop.f32.mrf.mxu0
        %v1739 = vadd.f32 %v1570, %v1738
        %1740 = vmatmul.bf16.gmra.mxu0 %v943
        %v1741 = vpop.f32.mrf.mxu0
        %v1742 = vadd.f32 %v1573, %v1741
        %v1743 = vpop.f32.mrf.mxu0
        %v1744 = vadd.f32 %v1575, %v1743
        %1745 = vmatmul.bf16.gmra.mxu0 %v947
        %v1746 = vpop.f32.mrf.mxu0
        %v1747 = vadd.f32 %v1578, %v1746
        %v1748 = vpop.f32.mrf.mxu0
        %v1749 = vadd.f32 %v1580, %v1748
        %1750 = vmatmul.bf16.gmra.mxu0 %v951
        %v1751 = vpop.f32.mrf.mxu0
        %v1752 = vadd.f32 %v1583, %v1751
        %v1753 = vpop.f32.mrf.mxu0
        %v1754 = vadd.f32 %v1585, %v1753
        %1755 = vmatmul.bf16.gmra.mxu0 %v955
        %v1756 = vpop.f32.mrf.mxu0
        %v1757 = vadd.f32 %v1588, %v1756
        %v1758 = vpop.f32.mrf.mxu0
        %v1759 = vadd.f32 %v1590, %v1758
        %1760 = vmatmul.bf16.gmra.mxu0 %v959
        %v1761 = vpop.f32.mrf.mxu0
        %v1762 = vadd.f32 %v1593, %v1761
        %v1763 = vpop.f32.mrf.mxu0
        %v1764 = vadd.f32 %v1595, %v1763
        %1765 = vmatmul.bf16.gmra.mxu0 %v963
        %v1766 = vpop.f32.mrf.mxu0
        %v1767 = vadd.f32 %v1598, %v1766
        %v1768 = vpop.f32.mrf.mxu0
        %v1769 = vadd.f32 %v1600, %v1768
        %1770 = vmatmul.bf16.gmra.mxu0 %v967
        %v1771 = vpop.f32.mrf.mxu0
        %v1772 = vadd.f32 %v1603, %v1771
        %v1773 = vpop.f32.mrf.mxu0
        %v1774 = vadd.f32 %v1605, %v1773
        %1775 = vmatmul.bf16.gmra.mxu0 %v971
        %v1776 = vpop.f32.mrf.mxu0
        %v1777 = vadd.f32 %v1608, %v1776
        %v1778 = vpop.f32.mrf.mxu0
        %v1779 = vadd.f32 %v1610, %v1778
        %1780 = vmatmul.bf16.gmra.mxu0 %v975
        %v1781 = vpop.f32.mrf.mxu0
        %v1782 = vadd.f32 %v1613, %v1781
        %v1783 = vpop.f32.mrf.mxu0
        %v1784 = vadd.f32 %v1615, %v1783
        %1785 = vmatmul.bf16.gmra.mxu0 %v979
        %v1786 = vpop.f32.mrf.mxu0
        %v1787 = vadd.f32 %v1618, %v1786
        %v1788 = vpop.f32.mrf.mxu0
        %v1789 = vadd.f32 %v1620, %v1788
        %1790 = vmatmul.bf16.gmra.mxu0 %v983
        %v1791 = vpop.f32.mrf.mxu0
        %v1792 = vadd.f32 %v1623, %v1791
        %v1793 = vpop.f32.mrf.mxu0
        %v1794 = vadd.f32 %v1625, %v1793
        %1795 = vmatmul.bf16.gmra.mxu0 %v987
        %v1796 = vpop.f32.mrf.mxu0
        %v1797 = vadd.f32 %v1628, %v1796
        %v1798 = vpop.f32.mrf.mxu0
        %v1799 = vadd.f32 %v1630, %v1798
        %1800 = vmatmul.bf16.gmra.mxu0 %v991
        %v1801 = vpop.f32.mrf.mxu0
        %v1802 = vadd.f32 %v1633, %v1801
        %v1803 = vpop.f32.mrf.mxu0
        %v1804 = vadd.f32 %v1635, %v1803
        %1805 = vmatmul.bf16.gmra.mxu0 %v995
        %v1806 = vpop.f32.mrf.mxu0
        %v1807 = vadd.f32 %v1638, %v1806
        %v1808 = vpop.f32.mrf.mxu0
        %v1809 = vadd.f32 %v1640, %v1808
        %1810 = vmatmul.bf16.gmra.mxu0 %v999
        %v1811 = vpop.f32.mrf.mxu0
        %v1812 = vadd.f32 %v1643, %v1811
        %v1813 = vpop.f32.mrf.mxu0
        %v1814 = vadd.f32 %v1645, %v1813
        %1815 = vmatmul.bf16.gmra.mxu0 %v1003
        %v1816 = vpop.f32.mrf.mxu0
        %v1817 = vadd.f32 %v1648, %v1816
        %v1818 = vpop.f32.mrf.mxu0
        %v1819 = vadd.f32 %v1650, %v1818
        %1820 = vmatmul.bf16.gmra.mxu0 %v1007
        %v1821 = vpop.f32.mrf.mxu0
        %v1822 = vadd.f32 %v1653, %v1821
        %v1823 = vpop.f32.mrf.mxu0
        %v1824 = vadd.f32 %v1655, %v1823
        %1825 = vmatmul.bf16.gmra.mxu0 %v1011
        %v1826 = vpop.f32.mrf.mxu0
        %v1827 = vadd.f32 %v1658, %v1826
        %v1828 = vpop.f32.mrf.mxu0
        %v1829 = vadd.f32 %v1660, %v1828
        %1830 = vmatmul.bf16.gmra.mxu0 %v1015
        %v1831 = vpop.f32.mrf.mxu0
        %v1832 = vadd.f32 %v1663, %v1831
        %v1833 = vpop.f32.mrf.mxu0
        %v1834 = vadd.f32 %v1665, %v1833
        %1835 = vmatmul.bf16.gmra.mxu0 %v1019
        %v1836 = vpop.f32.mrf.mxu0
        %v1837 = vadd.f32 %v1668, %v1836
        %v1838 = vpop.f32.mrf.mxu0
        %v1839 = vadd.f32 %v1670, %v1838
        %1840 = vmatmul.bf16.gmra.mxu0 %v1023
        %v1841 = vpop.f32.mrf.mxu0
        %v1842 = vadd.f32 %v1673, %v1841
        %v1843 = vpop.f32.mrf.mxu0
        %v1844 = vadd.f32 %v1675, %v1843
        %1845 = vmatmul.bf16.gmra.mxu0 %v1027
        %v1846 = vpop.f32.mrf.mxu0
        %v1847 = vadd.f32 %v1678, %v1846
        %v1848 = vpop.f32.mrf.mxu0
        %v1849 = vadd.f32 %v1680, %v1848
        %1850 = vmatmul.bf16.gmra.mxu0 %v1031
        %v1851 = vpop.f32.mrf.mxu0
        %v1852 = vadd.f32 %v1683, %v1851
        %v1853 = vpop.f32.mrf.mxu0
        %v1854 = vadd.f32 %v1685, %v1853
        %1855 = vmatmul.bf16.gmra.mxu0 %v1035
        %v1856 = vpop.f32.mrf.mxu0
        %v1857 = vadd.f32 %v1688, %v1856
        %v1858 = vpop.f32.mrf.mxu0
        %v1859 = vadd.f32 %v1690, %v1858
        %1860 = vmatmul.bf16.gmra.mxu0 %v1039
        %v1861 = vpop.f32.mrf.mxu0
        %v1862 = vadd.f32 %v1693, %v1861
        %v1863 = vpop.f32.mrf.mxu0
        %v1864 = vadd.f32 %v1695, %v1863
        %1865 = vmatmul.bf16.gmra.mxu0 %v1043
        %v1866 = vpop.f32.mrf.mxu0
        %v1867 = vadd.f32 %v1698, %v1866
        %v1868 = vpop.f32.mrf.mxu0
        %v1869 = vadd.f32 %v1700, %v1868
        %1870 = vmatmul.bf16.gmra.mxu0 %v1047
        %v1871 = vpop.f32.mrf.mxu0
        %v1872 = vadd.f32 %v1703, %v1871
        %v1873 = vpop.f32.mrf.mxu0
        %v1874 = vadd.f32 %v1705, %v1873
        %1875 = vdwg.mxu0
        %1876 = vmatpush.bf16.msra.mxu0 %v1336
        %1877 = vmatpush.bf16.msra.mxu0 %v1335
        %1878 = vmatpush.bf16.msra.mxu0 %v1334
        %1879 = vmatpush.bf16.msra.mxu0 %v1333
        %1880 = vmatpush.bf16.msra.mxu0 %v1332
        %1881 = vmatpush.bf16.msra.mxu0 %v1331
        %1882 = vmatpush.bf16.msra.mxu0 %v1330
        %1883 = vmatpush.bf16.msra.mxu0 %v1329
        %1884 = vmatmul.bf16.gmra.mxu0 %v924
        %v1885 = vpop.f32.mrf.mxu0
        %v1886 = vadd.f32 %v1717, %v1885
        %v1887 = vpop.f32.mrf.mxu0
        %v1888 = vadd.f32 %v1719, %v1887
        %1889 = vmatmul.bf16.gmra.mxu0 %v928
        %v1890 = vpop.f32.mrf.mxu0
        %v1891 = vadd.f32 %v1722, %v1890
        %v1892 = vpop.f32.mrf.mxu0
        %v1893 = vadd.f32 %v1724, %v1892
        %1894 = vmatmul.bf16.gmra.mxu0 %v932
        %v1895 = vpop.f32.mrf.mxu0
        %v1896 = vadd.f32 %v1727, %v1895
        %v1897 = vpop.f32.mrf.mxu0
        %v1898 = vadd.f32 %v1729, %v1897
        %1899 = vmatmul.bf16.gmra.mxu0 %v936
        %v1900 = vpop.f32.mrf.mxu0
        %v1901 = vadd.f32 %v1732, %v1900
        %v1902 = vpop.f32.mrf.mxu0
        %v1903 = vadd.f32 %v1734, %v1902
        %1904 = vmatmul.bf16.gmra.mxu0 %v940
        %v1905 = vpop.f32.mrf.mxu0
        %v1906 = vadd.f32 %v1737, %v1905
        %v1907 = vpop.f32.mrf.mxu0
        %v1908 = vadd.f32 %v1739, %v1907
        %1909 = vmatmul.bf16.gmra.mxu0 %v944
        %v1910 = vpop.f32.mrf.mxu0
        %v1911 = vadd.f32 %v1742, %v1910
        %v1912 = vpop.f32.mrf.mxu0
        %v1913 = vadd.f32 %v1744, %v1912
        %1914 = vmatmul.bf16.gmra.mxu0 %v948
        %v1915 = vpop.f32.mrf.mxu0
        %v1916 = vadd.f32 %v1747, %v1915
        %v1917 = vpop.f32.mrf.mxu0
        %v1918 = vadd.f32 %v1749, %v1917
        %1919 = vmatmul.bf16.gmra.mxu0 %v952
        %v1920 = vpop.f32.mrf.mxu0
        %v1921 = vadd.f32 %v1752, %v1920
        %v1922 = vpop.f32.mrf.mxu0
        %v1923 = vadd.f32 %v1754, %v1922
        %1924 = vmatmul.bf16.gmra.mxu0 %v956
        %v1925 = vpop.f32.mrf.mxu0
        %v1926 = vadd.f32 %v1757, %v1925
        %v1927 = vpop.f32.mrf.mxu0
        %v1928 = vadd.f32 %v1759, %v1927
        %1929 = vmatmul.bf16.gmra.mxu0 %v960
        %v1930 = vpop.f32.mrf.mxu0
        %v1931 = vadd.f32 %v1762, %v1930
        %v1932 = vpop.f32.mrf.mxu0
        %v1933 = vadd.f32 %v1764, %v1932
        %1934 = vmatmul.bf16.gmra.mxu0 %v964
        %v1935 = vpop.f32.mrf.mxu0
        %v1936 = vadd.f32 %v1767, %v1935
        %v1937 = vpop.f32.mrf.mxu0
        %v1938 = vadd.f32 %v1769, %v1937
        %1939 = vmatmul.bf16.gmra.mxu0 %v968
        %v1940 = vpop.f32.mrf.mxu0
        %v1941 = vadd.f32 %v1772, %v1940
        %v1942 = vpop.f32.mrf.mxu0
        %v1943 = vadd.f32 %v1774, %v1942
        %1944 = vmatmul.bf16.gmra.mxu0 %v972
        %v1945 = vpop.f32.mrf.mxu0
        %v1946 = vadd.f32 %v1777, %v1945
        %v1947 = vpop.f32.mrf.mxu0
        %v1948 = vadd.f32 %v1779, %v1947
        %1949 = vmatmul.bf16.gmra.mxu0 %v976
        %v1950 = vpop.f32.mrf.mxu0
        %v1951 = vadd.f32 %v1782, %v1950
        %v1952 = vpop.f32.mrf.mxu0
        %v1953 = vadd.f32 %v1784, %v1952
        %1954 = vmatmul.bf16.gmra.mxu0 %v980
        %v1955 = vpop.f32.mrf.mxu0
        %v1956 = vadd.f32 %v1787, %v1955
        %v1957 = vpop.f32.mrf.mxu0
        %v1958 = vadd.f32 %v1789, %v1957
        %1959 = vmatmul.bf16.gmra.mxu0 %v984
        %v1960 = vpop.f32.mrf.mxu0
        %v1961 = vadd.f32 %v1792, %v1960
        %v1962 = vpop.f32.mrf.mxu0
        %v1963 = vadd.f32 %v1794, %v1962
        %1964 = vmatmul.bf16.gmra.mxu0 %v988
        %v1965 = vpop.f32.mrf.mxu0
        %v1966 = vadd.f32 %v1797, %v1965
        %v1967 = vpop.f32.mrf.mxu0
        %v1968 = vadd.f32 %v1799, %v1967
        %1969 = vmatmul.bf16.gmra.mxu0 %v992
        %v1970 = vpop.f32.mrf.mxu0
        %v1971 = vadd.f32 %v1802, %v1970
        %v1972 = vpop.f32.mrf.mxu0
        %v1973 = vadd.f32 %v1804, %v1972
        %1974 = vmatmul.bf16.gmra.mxu0 %v996
        %v1975 = vpop.f32.mrf.mxu0
        %v1976 = vadd.f32 %v1807, %v1975
        %v1977 = vpop.f32.mrf.mxu0
        %v1978 = vadd.f32 %v1809, %v1977
        %1979 = vmatmul.bf16.gmra.mxu0 %v1000
        %v1980 = vpop.f32.mrf.mxu0
        %v1981 = vadd.f32 %v1812, %v1980
        %v1982 = vpop.f32.mrf.mxu0
        %v1983 = vadd.f32 %v1814, %v1982
        %1984 = vmatmul.bf16.gmra.mxu0 %v1004
        %v1985 = vpop.f32.mrf.mxu0
        %v1986 = vadd.f32 %v1817, %v1985
        %v1987 = vpop.f32.mrf.mxu0
        %v1988 = vadd.f32 %v1819, %v1987
        %1989 = vmatmul.bf16.gmra.mxu0 %v1008
        %v1990 = vpop.f32.mrf.mxu0
        %v1991 = vadd.f32 %v1822, %v1990
        %v1992 = vpop.f32.mrf.mxu0
        %v1993 = vadd.f32 %v1824, %v1992
        %1994 = vmatmul.bf16.gmra.mxu0 %v1012
        %v1995 = vpop.f32.mrf.mxu0
        %v1996 = vadd.f32 %v1827, %v1995
        %v1997 = vpop.f32.mrf.mxu0
        %v1998 = vadd.f32 %v1829, %v1997
        %1999 = vmatmul.bf16.gmra.mxu0 %v1016
        %v2000 = vpop.f32.mrf.mxu0
        %v2001 = vadd.f32 %v1832, %v2000
        %v2002 = vpop.f32.mrf.mxu0
        %v2003 = vadd.f32 %v1834, %v2002
        %2004 = vmatmul.bf16.gmra.mxu0 %v1020
        %v2005 = vpop.f32.mrf.mxu0
        %v2006 = vadd.f32 %v1837, %v2005
        %v2007 = vpop.f32.mrf.mxu0
        %v2008 = vadd.f32 %v1839, %v2007
        %2009 = vmatmul.bf16.gmra.mxu0 %v1024
        %v2010 = vpop.f32.mrf.mxu0
        %v2011 = vadd.f32 %v1842, %v2010
        %v2012 = vpop.f32.mrf.mxu0
        %v2013 = vadd.f32 %v1844, %v2012
        %2014 = vmatmul.bf16.gmra.mxu0 %v1028
        %v2015 = vpop.f32.mrf.mxu0
        %v2016 = vadd.f32 %v1847, %v2015
        %v2017 = vpop.f32.mrf.mxu0
        %v2018 = vadd.f32 %v1849, %v2017
        %2019 = vmatmul.bf16.gmra.mxu0 %v1032
        %v2020 = vpop.f32.mrf.mxu0
        %v2021 = vadd.f32 %v1852, %v2020
        %v2022 = vpop.f32.mrf.mxu0
        %v2023 = vadd.f32 %v1854, %v2022
        %2024 = vmatmul.bf16.gmra.mxu0 %v1036
        %v2025 = vpop.f32.mrf.mxu0
        %v2026 = vadd.f32 %v1857, %v2025
        %v2027 = vpop.f32.mrf.mxu0
        %v2028 = vadd.f32 %v1859, %v2027
        %2029 = vmatmul.bf16.gmra.mxu0 %v1040
        %v2030 = vpop.f32.mrf.mxu0
        %v2031 = vadd.f32 %v1862, %v2030
        %v2032 = vpop.f32.mrf.mxu0
        %v2033 = vadd.f32 %v1864, %v2032
        %2034 = vmatmul.bf16.gmra.mxu0 %v1044
        %v2035 = vpop.f32.mrf.mxu0
        %v2036 = vadd.f32 %v1867, %v2035
        %v2037 = vpop.f32.mrf.mxu0
        %v2038 = vadd.f32 %v1869, %v2037
        %2039 = vmatmul.bf16.gmra.mxu0 %v1048
        %v2040 = vpop.f32.mrf.mxu0
        %v2041 = vadd.f32 %v1872, %v2040
        %v2042 = vpop.f32.mrf.mxu0
        %v2043 = vadd.f32 %v1874, %v2042
        %2044 = vdwg.mxu0
        %v2045 = vadd.f32 %v277, %v1886
        %v2046 = vadd.f32 %v278, %v1888
        %v2047 = vadd.f32 %v279, %v1891
        %v2048 = vadd.f32 %v280, %v1893
        %v2049 = vadd.f32 %v281, %v1896
        %v2050 = vadd.f32 %v282, %v1898
        %v2051 = vadd.f32 %v283, %v1901
        %v2052 = vadd.f32 %v284, %v1903
        %v2053 = vadd.f32 %v285, %v1906
        %v2054 = vadd.f32 %v286, %v1908
        %v2055 = vadd.f32 %v287, %v1911
        %v2056 = vadd.f32 %v288, %v1913
        %v2057 = vadd.f32 %v289, %v1916
        %v2058 = vadd.f32 %v290, %v1918
        %v2059 = vadd.f32 %v291, %v1921
        %v2060 = vadd.f32 %v292, %v1923
        %v2061 = vadd.f32 %v293, %v1926
        %v2062 = vadd.f32 %v294, %v1928
        %v2063 = vadd.f32 %v295, %v1931
        %v2064 = vadd.f32 %v296, %v1933
        %v2065 = vadd.f32 %v297, %v1936
        %v2066 = vadd.f32 %v298, %v1938
        %v2067 = vadd.f32 %v299, %v1941
        %v2068 = vadd.f32 %v300, %v1943
        %v2069 = vadd.f32 %v301, %v1946
        %v2070 = vadd.f32 %v302, %v1948
        %v2071 = vadd.f32 %v303, %v1951
        %v2072 = vadd.f32 %v304, %v1953
        %v2073 = vadd.f32 %v305, %v1956
        %v2074 = vadd.f32 %v306, %v1958
        %v2075 = vadd.f32 %v307, %v1961
        %v2076 = vadd.f32 %v308, %v1963
        %v2077 = vadd.f32 %v309, %v1966
        %v2078 = vadd.f32 %v310, %v1968
        %v2079 = vadd.f32 %v311, %v1971
        %v2080 = vadd.f32 %v312, %v1973
        %v2081 = vadd.f32 %v313, %v1976
        %v2082 = vadd.f32 %v314, %v1978
        %v2083 = vadd.f32 %v315, %v1981
        %v2084 = vadd.f32 %v316, %v1983
        %v2085 = vadd.f32 %v317, %v1986
        %v2086 = vadd.f32 %v318, %v1988
        %v2087 = vadd.f32 %v319, %v1991
        %v2088 = vadd.f32 %v320, %v1993
        %v2089 = vadd.f32 %v321, %v1996
        %v2090 = vadd.f32 %v322, %v1998
        %v2091 = vadd.f32 %v323, %v2001
        %v2092 = vadd.f32 %v324, %v2003
        %v2093 = vadd.f32 %v325, %v2006
        %v2094 = vadd.f32 %v326, %v2008
        %v2095 = vadd.f32 %v327, %v2011
        %v2096 = vadd.f32 %v328, %v2013
        %v2097 = vadd.f32 %v329, %v2016
        %v2098 = vadd.f32 %v330, %v2018
        %v2099 = vadd.f32 %v331, %v2021
        %v2100 = vadd.f32 %v332, %v2023
        %v2101 = vadd.f32 %v333, %v2026
        %v2102 = vadd.f32 %v334, %v2028
        %v2103 = vadd.f32 %v335, %v2031
        %v2104 = vadd.f32 %v336, %v2033
        %v2105 = vadd.f32 %v337, %v2036
        %v2106 = vadd.f32 %v338, %v2038
        %v2107 = vadd.f32 %v339, %v2041
        %v2108 = vadd.f32 %v340, %v2043
        %2109 = vst [vmem:[%s203] sm:$0xff] %v2045
        %2110 = vst [vmem:[%s203 + $0x8] sm:$0xff] %v2046
        %2111 = vst [vmem:[%s203 + $0x10] sm:$0xff] %v2047
        %2112 = vst [vmem:[%s203 + $0x18] sm:$0xff] %v2048
        %2113 = vst [vmem:[%s203 + $0x20] sm:$0xff] %v2049
        %2114 = vst [vmem:[%s203 + $0x28] sm:$0xff] %v2050
        %2115 = vst [vmem:[%s203 + $0x30] sm:$0xff] %v2051
        %2116 = vst [vmem:[%s203 + $0x38] sm:$0xff] %v2052
        %2117 = vst [vmem:[%s203 + $0x40] sm:$0xff] %v2053
        %2118 = vst [vmem:[%s203 + $0x48] sm:$0xff] %v2054
        %2119 = vst [vmem:[%s203 + $0x50] sm:$0xff] %v2055
        %2120 = vst [vmem:[%s203 + $0x58] sm:$0xff] %v2056
        %2121 = vst [vmem:[%s203 + $0x60] sm:$0xff] %v2057
        %2122 = vst [vmem:[%s203 + $0x68] sm:$0xff] %v2058
        %2123 = vst [vmem:[%s203 + $0x70] sm:$0xff] %v2059
        %2124 = vst [vmem:[%s203 + $0x78] sm:$0xff] %v2060
        %2125 = vst [vmem:[%s203 + $0x80] sm:$0xff] %v2061
        %2126 = vst [vmem:[%s203 + $0x88] sm:$0xff] %v2062
        %2127 = vst [vmem:[%s203 + $0x90] sm:$0xff] %v2063
        %2128 = vst [vmem:[%s203 + $0x98] sm:$0xff] %v2064
        %2129 = vst [vmem:[%s203 + $0xa0] sm:$0xff] %v2065
        %2130 = vst [vmem:[%s203 + $0xa8] sm:$0xff] %v2066
        %2131 = vst [vmem:[%s203 + $0xb0] sm:$0xff] %v2067
        %2132 = vst [vmem:[%s203 + $0xb8] sm:$0xff] %v2068
        %2133 = vst [vmem:[%s203 + $0xc0] sm:$0xff] %v2069
        %2134 = vst [vmem:[%s203 + $0xc8] sm:$0xff] %v2070
        %2135 = vst [vmem:[%s203 + $0xd0] sm:$0xff] %v2071
        %2136 = vst [vmem:[%s203 + $0xd8] sm:$0xff] %v2072
        %2137 = vst [vmem:[%s203 + $0xe0] sm:$0xff] %v2073
        %2138 = vst [vmem:[%s203 + $0xe8] sm:$0xff] %v2074
        %2139 = vst [vmem:[%s203 + $0xf0] sm:$0xff] %v2075
        %2140 = vst [vmem:[%s203 + $0xf8] sm:$0xff] %v2076
        %2141 = vst [vmem:[%s203 + $0x100] sm:$0xff] %v2077
        %2142 = vst [vmem:[%s203 + $0x108] sm:$0xff] %v2078
        %2143 = vst [vmem:[%s203 + $0x110] sm:$0xff] %v2079
        %2144 = vst [vmem:[%s203 + $0x118] sm:$0xff] %v2080
        %2145 = vst [vmem:[%s203 + $0x120] sm:$0xff] %v2081
        %2146 = vst [vmem:[%s203 + $0x128] sm:$0xff] %v2082
        %2147 = vst [vmem:[%s203 + $0x130] sm:$0xff] %v2083
        %2148 = vst [vmem:[%s203 + $0x138] sm:$0xff] %v2084
        %2149 = vst [vmem:[%s203 + $0x140] sm:$0xff] %v2085
        %2150 = vst [vmem:[%s203 + $0x148] sm:$0xff] %v2086
        %2151 = vst [vmem:[%s203 + $0x150] sm:$0xff] %v2087
        %2152 = vst [vmem:[%s203 + $0x158] sm:$0xff] %v2088
        %2153 = vst [vmem:[%s203 + $0x160] sm:$0xff] %v2089
        %2154 = vst [vmem:[%s203 + $0x168] sm:$0xff] %v2090
        %2155 = vst [vmem:[%s203 + $0x170] sm:$0xff] %v2091
        %2156 = vst [vmem:[%s203 + $0x178] sm:$0xff] %v2092
        %2157 = vst [vmem:[%s203 + $0x180] sm:$0xff] %v2093
        %2158 = vst [vmem:[%s203 + $0x188] sm:$0xff] %v2094
        %2159 = vst [vmem:[%s203 + $0x190] sm:$0xff] %v2095
        %2160 = vst [vmem:[%s203 + $0x198] sm:$0xff] %v2096
        %2161 = vst [vmem:[%s203 + $0x1a0] sm:$0xff] %v2097
        %2162 = vst [vmem:[%s203 + $0x1a8] sm:$0xff] %v2098
        %2163 = vst [vmem:[%s203 + $0x1b0] sm:$0xff] %v2099
        %2164 = vst [vmem:[%s203 + $0x1b8] sm:$0xff] %v2100
        %2165 = vst [vmem:[%s203 + $0x1c0] sm:$0xff] %v2101
        %2166 = vst [vmem:[%s203 + $0x1c8] sm:$0xff] %v2102
        %2167 = vst [vmem:[%s203 + $0x1d0] sm:$0xff] %v2103
        %2168 = vst [vmem:[%s203 + $0x1d8] sm:$0xff] %v2104
        %2169 = vst [vmem:[%s203 + $0x1e0] sm:$0xff] %v2105
        %2170 = vst [vmem:[%s203 + $0x1e8] sm:$0xff] %v2106
        %2171 = vst [vmem:[%s203 + $0x1f0] sm:$0xff] %v2107
        %2172 = vst [vmem:[%s203 + $0x1f8] sm:$0xff] %v2108
        %s2173 = sand.u32 %s98, 1
        %s2174 = scalar_lea.sflag [#allocation8], %s2173
        %s2175 = sand.u32 %s98, 1
        %s2176 = smul.addr %s2175, 512
        %s2177 = scalar_lea.vmem [#allocation11], %s2176
        // Predicated region
        $region41: #{tpu_custom_call.1} parent=27 // pred_check
          %p2178 = pneg %p108
        $region42: #{tpu_custom_call.1} parent=27 // pred_check_branch
          %2180 = sbr.rel (%p2178) target = $region44
        $region43: #{tpu_custom_call.1} parent=27 // pred_region
          %s2181 = sld [smem:[#allocation3 + %s41]]
          %s2182 = smul.u32 64, %s2181
          %2184 = vsyncadd %s2174, 0
          %s2185 = smul.addr %s2182, 8
          %s2186 = scalar_lea.hbm %s5, %s2185
          %s2187 = sshll.u32 %s2177, 4
          %s2188 = int_to_ptr.vmem [resolvable:$true] %s2187
          %s2189 = sshll.u32 %s2186, 4
          %s2190 = int_to_ptr.hbm [resolvable:$true] %s2189
          %2195 = dma.vmem_to_hbm [thread:$0]  %s2188, 8192, %s2190, %s2174, 128, 128, 8
        $region44: #{tpu_custom_call.1} parent=27 // pred_fallthru
          _
      $region28: #{tpu_custom_call.1} parent=5 // pred_fallthru
        _
      %p2196 = scmp.le.s32.totalorder 2, %s36
      // Predicated region
      $region45: #{tpu_custom_call.1} parent=5 // pred_check
        %p2197 = pneg %p2196
      $region46: #{tpu_custom_call.1} parent=5 // pred_check_branch
        %2199 = sbr.rel (%p2197) target = $region48
      $region47: #{tpu_custom_call.1} parent=5 // pred_region
        %s2200 = ssub.s32 %s36, 2
        // Predicated region
        $region49: #{tpu_custom_call.1} parent=47 // pred_check
          %p2201 = pneg %p114
        $region50: #{tpu_custom_call.1} parent=47 // pred_check_branch
          %2203 = sbr.rel (%p2201) target = $region52
        $region51: #{tpu_custom_call.1} parent=47 // pred_region
          %s2204 = sand.u32 %s99, 1
          %s2205 = scalar_lea.sflag [#allocation8], %s2204
          %s2206 = sand.u32 %s99, 1
          %s2207 = smul.addr %s2206, 512
          %s2208 = scalar_lea.vmem [#allocation11], %s2207
          %2210 = dma.done %s2205, 8192
        $region52: #{tpu_custom_call.1} parent=47 // pred_fallthru
          _
      $region48: #{tpu_custom_call.1} parent=5 // pred_fallthru
        _
    $region6: #{tpu_custom_call.1} parent=1 // loop_footer
      %s40 = sadd.s32 1, %s36
    $region7: #{tpu_custom_call.1} parent=1 // loop_footer_branch
      %35 = sbr.rel target = $region3
    $region8: #{tpu_custom_call.1} parent=1 // loop_exit
      _
    %2211 = vsyncpa [#allocation7], 1
    %s2212 = scalar_lea.sflag [#allocation7], 1
    %2213 = vsyncpa %s2212, 1
    %2214 = vsyncpa [#allocation10], 1
    %2215 = vsyncpa [#allocation8], 1
    %s2216 = scalar_lea.sflag [#allocation8], 1
    %2217 = vsyncpa %s2216, 1

</llo_original>
